<compile_context>
chip_gen: v7x
topology: tpu7x:2x2x1
jax: 0.10.0
libtpu: 0.0.40
codegen_flags: <defaults>
</compile_context>

<pallas_src>
import math
from functools import partial

import jax
import jax.numpy as jnp
from jax import lax
from jax.experimental import pallas as pl
from jax.experimental.pallas import tpu as pltpu


def _cross_attention_kernel(latent_ref, k_ref, v_ref,
                            wq_ref, bq_ref, wo_ref, bo_ref,
                            out_ref, *, n_heads, sk, sk_pad):
    """One grid step == one (batch, query-tile).

    latent_ref : (1, TQ, D)
    k_ref/v_ref: (1, H, Sk_pad, dh)   -- K/V already projected + head-split
    wq_ref     : (H, D, dh)           -- softmax scale folded in
    bq_ref     : (H, 1, dh) f32
    wo_ref     : (H, dh, D)
    bo_ref     : (1, D) f32
    out_ref    : (1, TQ, D)
    """
    cdt = wq_ref.dtype                      # MXU operand dtype (bf16 or f32)
    x = latent_ref[0].astype(cdt)           # (TQ, D)

    # Static key-padding mask: additive -1e30 bias on padded score columns
    # (hoisted out of the head loop).
    if sk_pad != sk:
        col = lax.broadcasted_iota(jnp.int32, (1, sk_pad), 1)
        pad_bias = jnp.where(col < sk, 0.0, -1e30).astype(jnp.float32)
    else:
        pad_bias = None

    # TODO(synk): for self-attention-sized Sk (Sq == Sk >= 2k) tile Sk with an
    # online (flash-style) softmax instead of materializing (TQ, Sk_pad) scores.
    acc = None                               # (TQ, D) f32 running out-projection
    for h in range(n_heads):                 # n_heads is small & compile-time
        # Per-head Q projection: head-split weights => no lane-offset slicing.
        qh = jnp.dot(x, wq_ref[h], preferred_element_type=jnp.float32) + bq_ref[h]
        qh = qh.astype(cdt)                  # (TQ, dh)
        kh = k_ref[0, h]                     # (Sk_pad, dh) -- leading-axis index, free
        vh = v_ref[0, h]                     # (Sk_pad, dh)

        # scores = qh @ kh^T, contracting d_head directly (no XLU transpose).
        s = lax.dot_general(qh, kh, (((1,), (1,)), ((), ())),
                            preferred_element_type=jnp.float32)     # (TQ, Sk_pad)
        if pad_bias is not None:
            s = s + pad_bias

        # Numerically-stable softmax kept in f32 (v5e has no bf16 VPU/EUP);
        # the divide goes to the EUP via approx reciprocal.
        m = jnp.max(s, axis=-1, keepdims=True)
        e = jnp.exp(s - m)
        p = e * pl.reciprocal(jnp.sum(e, axis=-1, keepdims=True), approx=True)

        oh = jnp.dot(p.astype(cdt), vh,
                     preferred_element_type=jnp.float32)             # (TQ, dh)

        # Accumulate directly into the output projection: no per-head concat,
        # and every stored matmul result stays lane-dense (width D).
        # TODO(synk): measure vs a single fused (TQ,D)@(D,D) out-projection.
        contrib = jnp.dot(oh.astype(cdt), wo_ref[h],
                          preferred_element_type=jnp.float32)        # (TQ, D)
        acc = contrib if acc is None else acc + contrib

    out_ref[0] = (acc + bo_ref[0]).astype(out_ref.dtype)


def _vmem_capacity_bytes():
    """Physical per-core VMEM; conservative 64 MiB (v7x) fallback."""
    try:
        info = pltpu.get_tpu_info()
        cap = getattr(info, "vmem_capacity_bytes", None)
        if cap:
            return int(cap)
    except Exception:
        pass
    return 64 * 1024 * 1024


def _choose_q_tile(sq, desired):
    """Largest divisor of sq <= desired, preferring multiples of 128 (v5e MXU)
    then multiples of 8; else sq itself (block == full dim is always legal)."""
    if sq <= desired:
        return sq
    for step in (128, 8):
        t = (desired // step) * step
        while t >= step:
            if sq % t == 0:
                return t
            t -= step
    # TODO(synk): masked remainder path for Sq with no small multiple-of-8 divisor.
    return sq


def _vmem_limit_bytes(tq, sk_pad, d, dh, n_heads, op_bytes, out_bytes, cap_bytes):
    """Per-step VMEM footprint (+50% headroom), floored at 32 MiB and capped at
    ~88% of physical VMEM (generation-aware; never exceeds v7x's 64 MiB)."""
    act = 2 * tq * d * op_bytes                          # latent blocks (dbl-buf)
    act += 2 * tq * d * out_bytes                        # output blocks
    act += 2 * 2 * n_heads * sk_pad * dh * op_bytes      # K and V blocks (dbl-buf)
    wts = 2 * n_heads * d * dh * op_bytes                # wq + wo, single-buffered
    wts += (n_heads * dh + d) * 4                        # biases (f32)
    scratch = 4 * (2 * tq * sk_pad + 3 * tq * d + 3 * tq * dh)  # f32 intermediates
    total = int((act + wts + scratch) * 1.5)
    cap = int(cap_bytes)
    floor = min(32 * 1024 * 1024, cap)
    return max(min(total, cap), floor)


def cross_attention(latent, context, params, *, n_heads, q_tile=None,
                    matmul_dtype=None):
    """Pallas CrossAttention forward.

    params: dict with torch.nn.Linear-shaped weights ((out, in)) and biases.
    q_tile: query-tile size; default is generation-aware (512 on 128 MiB VMEM
            parts, 256 on v7x's 64 MiB).
    matmul_dtype: MXU operand dtype; default bf16 (native MXU dtype on all
            generations).  Matmuls always accumulate in f32; softmax stays f32.
    """
    B, Sq, D = latent.shape
    _, Sk, Dc = context.shape
    assert D % n_heads == 0
    d_head = D // n_heads
    scale = 1.0 / math.sqrt(d_head)

    out_dtype = latent.dtype
    wdt = matmul_dtype if matmul_dtype is not None else jnp.bfloat16
    op_bytes = jnp.dtype(wdt).itemsize
    out_bytes = jnp.dtype(out_dtype).itemsize

    vmem_cap = _vmem_capacity_bytes()
    if q_tile is None:
        # v5e/v6e: 128 MiB VMEM -> bigger tiles amortize per-step overhead;
        # v7x: 64 MiB -> keep working set ~32 MiB.
        q_tile = 512 if vmem_cap >= 100 * 1024 * 1024 else 256

    # ---- Weight preprocessing (torch Linear: y = x @ W.T + b, W is (out,in)).
    # Q / out-proj weights are head-split so the kernel never lane-slices.
    wq_t = params["q_w"].T.astype(jnp.float32) * scale            # (D, D) in,out
    wq_h = wq_t.reshape(D, n_heads, d_head).transpose(1, 0, 2).astype(wdt)  # (H,D,dh)
    bq_h = (params["q_b"].astype(jnp.float32) * scale
            ).reshape(n_heads, 1, d_head)                         # (H,1,dh) f32
    wo_h = params["o_w"].T.reshape(n_heads, d_head, D).astype(wdt)  # (H,dh,D)
    bo = params["o_b"].reshape(1, D).astype(jnp.float32)

    # ---- K/V projections hoisted out of the kernel: computed once per batch,
    # head-split to (B, H, Sk_pad, dh), Sk padded to a multiple of 128.
    ctx32 = context.astype(jnp.float32)
    k_full = jnp.einsum("bsc,cd->bsd", ctx32, params["k_w"].T.astype(jnp.float32)) \
        + params["k_b"].astype(jnp.float32)                       # (B, Sk, D)
    v_full = jnp.einsum("bsc,cd->bsd", ctx32, params["v_w"].T.astype(jnp.float32)) \
        + params["v_b"].astype(jnp.float32)
    k_h = k_full.reshape(B, Sk, n_heads, d_head).transpose(0, 2, 1, 3)  # (B,H,Sk,dh)
    v_h = v_full.reshape(B, Sk, n_heads, d_head).transpose(0, 2, 1, 3)
    sk_pad = ((Sk + 127) // 128) * 128
    if sk_pad != Sk:
        pad = ((0, 0), (0, 0), (0, sk_pad - Sk), (0, 0))
        k_h = jnp.pad(k_h, pad)
        v_h = jnp.pad(v_h, pad)
    k_h = k_h.astype(wdt)
    v_h = v_h.astype(wdt)

    x = latent.astype(wdt)

    tq = _choose_q_tile(Sq, q_tile)
    grid = (B, Sq // tq)

    kernel = partial(_cross_attention_kernel, n_heads=n_heads, sk=Sk, sk_pad=sk_pad)

    def _const(shape):
        # Constant across the whole grid -> single-buffer (halves weight VMEM).
        return pl.BlockSpec(shape, lambda b, q: tuple(0 for _ in shape),
                            pipeline_mode=pl.Buffered(1))

    # Advisory cost estimate so XLA can overlap surrounding UNet ops.
    flops = 4 * B * Sq * D * D + 4 * B * Sq * sk_pad * D
    bytes_accessed = (B * Sq * D * op_bytes                      # latent in
                      + 2 * B * n_heads * sk_pad * d_head * op_bytes  # K, V
                      + B * Sq * D * out_bytes                   # output
                      + 2 * n_heads * D * d_head * op_bytes      # wq, wo
                      + (n_heads * d_head + D) * 4)              # biases
    cost = pl.CostEstimate(flops=int(flops),
                           transcendentals=int(B * Sq * sk_pad),
                           bytes_accessed=int(bytes_accessed))

    # TODO(synk): on v7x, consider pltpu.CORE_PARALLEL on the batch axis (B=2
    # CFG maps 1:1 onto the 2 TensorCores) if xprof shows one core idle.
    return pl.pallas_call(
        kernel,
        out_shape=jax.ShapeDtypeStruct((B, Sq, D), out_dtype),
        grid_spec=pltpu.PrefetchScalarGridSpec(
            num_scalar_prefetch=0,
            grid=grid,
            in_specs=[
                pl.BlockSpec((1, tq, D), lambda b, q: (b, q, 0)),           # latent
                pl.BlockSpec((1, n_heads, sk_pad, d_head),
                             lambda b, q: (b, 0, 0, 0)),                    # K (per-batch)
                pl.BlockSpec((1, n_heads, sk_pad, d_head),
                             lambda b, q: (b, 0, 0, 0)),                    # V (per-batch)
                _const((n_heads, D, d_head)),                               # wq
                _const((n_heads, 1, d_head)),                               # bq
                _const((n_heads, d_head, D)),                               # wo
                _const((1, D)),                                             # bo
            ],
            out_specs=pl.BlockSpec((1, tq, D), lambda b, q: (b, q, 0)),
        ),
        compiler_params=pltpu.CompilerParams(
            dimension_semantics=("parallel", "parallel"),
            vmem_limit_bytes=_vmem_limit_bytes(
                tq, sk_pad, D, d_head, n_heads, op_bytes, out_bytes,
                int(vmem_cap * 0.88)),
        ),
        cost_estimate=cost,
    )(x, k_h, v_h, wq_h, bq_h, wo_h, bo)


def _reference(latent, context, params, *, n_heads):
    """Pure-JAX reference mirroring the PyTorch forward pass."""
    B, Sq, D = latent.shape
    d_head = D // n_heads
    lin = lambda x, w, b: jnp.einsum("bsi,oi->bso", x, w) + b
    q = lin(latent, params["q_w"], params["q_b"]).reshape(B, Sq, n_heads, d_head).transpose(0, 2, 1, 3)
    k = lin(context, params["k_w"], params["k_b"]).reshape(B, -1, n_heads, d_head).transpose(0, 2, 1, 3)
    v = lin(context, params["v_w"], params["v_b"]).reshape(B, -1, n_heads, d_head).transpose(0, 2, 1, 3)
    w = jnp.einsum("bhqd,bhkd->bhqk", q, k) / math.sqrt(d_head)
    w = jax.nn.softmax(w, axis=-1)
    o = jnp.einsum("bhqk,bhkd->bhqd", w, v).transpose(0, 2, 1, 3).reshape(B, Sq, D)
    return lin(o, params["o_w"], params["o_b"])


if __name__ == "__main__":
    # Small, module-consistent shapes (Sq != Sk to exercise true cross-attn,
    # Sk=8 exercises the key-padding/masking path since Sk is padded to 128).
    B, Sq, Sk = 2, 16, 8
    n_heads, d_embed, d_cross = 4, 32, 16

    key = jax.random.PRNGKey(0)
    ks = jax.random.split(key, 10)

    # Deterministic synthetic parameters (torch.nn.Linear shapes: (out, in)).
    params = {
        "q_w": jax.random.normal(ks[0], (d_embed, d_embed), jnp.float32) * 0.1,
        "q_b": jax.random.normal(ks[1], (d_embed,), jnp.float32) * 0.1,
        "k_w": jax.random.normal(ks[2], (d_embed, d_cross), jnp.float32) * 0.1,
        "k_b": jax.random.normal(ks[3], (d_embed,), jnp.float32) * 0.1,
        "v_w": jax.random.normal(ks[4], (d_embed, d_cross), jnp.float32) * 0.1,
        "v_b": jax.random.normal(ks[5], (d_embed,), jnp.float32) * 0.1,
        "o_w": jax.random.normal(ks[6], (d_embed, d_embed), jnp.float32) * 0.1,
        "o_b": jax.random.normal(ks[7], (d_embed,), jnp.float32) * 0.1,
    }

    latent = jax.random.normal(ks[8], (B, Sq, d_embed), jnp.float32)
    context = jax.random.normal(ks[9], (B, Sk, d_cross), jnp.float32)

    ref = _reference(latent, context, params, n_heads=n_heads)

    # Default path: bf16 MXU operands, f32 accumulation, whole-Sq query tile.
    out_bf16 = cross_attention(latent, context, params, n_heads=n_heads)
    out_bf16 = jax.block_until_ready(out_bf16)
    assert out_bf16.shape == (B, Sq, d_embed)
    assert jnp.allclose(out_bf16, ref, atol=5e-2, rtol=5e-2), "bf16 mismatch vs reference"

    # f32 MXU operands; q_tile=8 forces a 2-step query-tile grid per batch.
    out_f32 = cross_attention(latent, context, params, n_heads=n_heads,
                              q_tile=8, matmul_dtype=jnp.float32)
    out_f32 = jax.block_until_ready(out_f32)
    assert out_f32.shape == (B, Sq, d_embed)
    assert jnp.allclose(out_f32, ref, atol=2e-3, rtol=2e-3), "f32 mismatch vs reference"

    print("KERNEL_OK")
</pallas_src>

<mosaic_0001>
module attributes {stable_mosaic.version = 11 : i64} {
  func.func @_cross_attention_kernel(%arg0: i32, %arg1: i32, %arg2: memref<1x16x32xbf16, #tpu.memory_space<vmem>>, %arg3: memref<1x4x128x8xbf16, #tpu.memory_space<vmem>>, %arg4: memref<1x4x128x8xbf16, #tpu.memory_space<vmem>>, %arg5: memref<4x32x8xbf16, #tpu.memory_space<vmem>>, %arg6: memref<4x1x8xf32, #tpu.memory_space<vmem>>, %arg7: memref<4x8x32xbf16, #tpu.memory_space<vmem>>, %arg8: memref<1x32xf32, #tpu.memory_space<vmem>>, %arg9: memref<1x16x32xf32, #tpu.memory_space<vmem>>) attributes {dimension_semantics = [#tpu.dimension_semantics<parallel>, #tpu.dimension_semantics<parallel>], iteration_bounds = array<i64: 2, 1>, scalar_prefetch = 0 : i64, scratch_operands = 0 : i64, tpu.core_type = #tpu.core_type<tc>, window_params = [{transform_indices = @transform_0, window_bounds = array<i64: 1, 16, 32>}, {transform_indices = @transform_1, window_bounds = array<i64: 1, 4, 128, 8>}, {transform_indices = @transform_2, window_bounds = array<i64: 1, 4, 128, 8>}, {pipeline_mode = #tpu.pipeline_mode<synchronous>, transform_indices = @transform_3, window_bounds = array<i64: 4, 32, 8>}, {pipeline_mode = #tpu.pipeline_mode<synchronous>, transform_indices = @transform_4, window_bounds = array<i64: 4, 1, 8>}, {pipeline_mode = #tpu.pipeline_mode<synchronous>, transform_indices = @transform_5, window_bounds = array<i64: 4, 8, 32>}, {pipeline_mode = #tpu.pipeline_mode<synchronous>, transform_indices = @transform_6, window_bounds = array<i64: 1, 32>}, {transform_indices = @transform_7, window_bounds = array<i64: 1, 16, 32>}]} {
    %c0 = arith.constant 0 : index
    %c0_0 = arith.constant 0 : index
    %c0_1 = arith.constant 0 : index
    %0 = vector.load %arg2[%c0, %c0_0, %c0_1] : memref<1x16x32xbf16, #tpu.memory_space<vmem>>, vector<1x16x32xbf16>
    %1 = vector.shape_cast %0 : vector<1x16x32xbf16> to vector<16x32xbf16>
    %2 = tpu.iota {dimensions = array<i32: 1>} : vector<1x128xi32>
    %c8_i32 = arith.constant 8 : i32
    %3 = vector.broadcast %c8_i32 : i32 to vector<1x128xi32>
    %4 = arith.cmpi slt, %2, %3 : vector<1x128xi32>
    %cst = arith.constant 0.000000e+00 : f32
    %cst_2 = arith.constant -1.000000e+30 : f32
    %5 = vector.broadcast %cst : f32 to vector<1x128xf32>
    %6 = vector.broadcast %cst_2 : f32 to vector<1x128xf32>
    %7 = arith.select %4, %5, %6 : vector<1x128xi1>, vector<1x128xf32>
    %c0_3 = arith.constant 0 : index
    %c0_4 = arith.constant 0 : index
    %c0_5 = arith.constant 0 : index
    %8 = vector.load %arg5[%c0_3, %c0_4, %c0_5] : memref<4x32x8xbf16, #tpu.memory_space<vmem>>, vector<1x32x8xbf16>
    %9 = vector.shape_cast %8 : vector<1x32x8xbf16> to vector<32x8xbf16>
    %cst_6 = arith.constant dense<0.000000e+00> : vector<16x8xf32>
    %10 = tpu.matmul %1, %9, %cst_6 {dimension_numbers = #tpu.dot_dimension_numbers<[1], [0], [0], [1], [0, 0, 1, 1], [], []>} : vector<16x32xbf16>, vector<32x8xbf16>, vector<16x8xf32> -> vector<16x8xf32>
    %c0_7 = arith.constant 0 : index
    %c0_8 = arith.constant 0 : index
    %c0_9 = arith.constant 0 : index
    %11 = vector.load %arg6[%c0_7, %c0_8, %c0_9] : memref<4x1x8xf32, #tpu.memory_space<vmem>>, vector<1x1x8xf32>
    %12 = vector.shape_cast %11 : vector<1x1x8xf32> to vector<1x8xf32>
    %13 = vector.broadcast %12 : vector<1x8xf32> to vector<16x8xf32>
    %14 = arith.addf %10, %13 : vector<16x8xf32>
    %15 = arith.truncf %14 : vector<16x8xf32> to vector<16x8xbf16>
    %c0_10 = arith.constant 0 : index
    %c0_11 = arith.constant 0 : index
    %c0_12 = arith.constant 0 : index
    %c0_13 = arith.constant 0 : index
    %16 = vector.load %arg3[%c0_10, %c0_11, %c0_12, %c0_13] : memref<1x4x128x8xbf16, #tpu.memory_space<vmem>>, vector<1x1x128x8xbf16>
    %17 = vector.shape_cast %16 : vector<1x1x128x8xbf16> to vector<128x8xbf16>
    %c0_14 = arith.constant 0 : index
    %c0_15 = arith.constant 0 : index
    %c0_16 = arith.constant 0 : index
    %c0_17 = arith.constant 0 : index
    %18 = vector.load %arg4[%c0_14, %c0_15, %c0_16, %c0_17] : memref<1x4x128x8xbf16, #tpu.memory_space<vmem>>, vector<1x1x128x8xbf16>
    %19 = vector.shape_cast %18 : vector<1x1x128x8xbf16> to vector<128x8xbf16>
    %cst_18 = arith.constant dense<0.000000e+00> : vector<16x128xf32>
    %20 = tpu.matmul %15, %17, %cst_18 {dimension_numbers = #tpu.dot_dimension_numbers<[1], [1], [0], [0], [0, 0, 1, 0], [], []>} : vector<16x8xbf16>, vector<128x8xbf16>, vector<16x128xf32> -> vector<16x128xf32>
    %21 = vector.broadcast %7 : vector<1x128xf32> to vector<16x128xf32>
    %22 = arith.addf %20, %21 : vector<16x128xf32>
    %cst_19 = arith.constant dense<0xFF800000> : vector<16xf32>
    %23 = vector.multi_reduction <maximumf>, %22, %cst_19 [1] : vector<16x128xf32> to vector<16xf32>
    %24 = vector.shape_cast %23 : vector<16xf32> to vector<16x1xf32>
    %25 = vector.broadcast %24 : vector<16x1xf32> to vector<16x128xf32>
    %26 = arith.subf %22, %25 : vector<16x128xf32>
    %27 = math.exp %26 : vector<16x128xf32>
    %cst_20 = arith.constant dense<0.000000e+00> : vector<16xf32>
    %28 = vector.multi_reduction <add>, %27, %cst_20 [1] : vector<16x128xf32> to vector<16xf32>
    %29 = vector.shape_cast %28 : vector<16xf32> to vector<16x1xf32>
    %30 = tpu.reciprocal %29 {approx = true} : vector<16x1xf32> -> vector<16x1xf32>
    %31 = vector.broadcast %30 : vector<16x1xf32> to vector<16x128xf32>
    %32 = arith.mulf %27, %31 : vector<16x128xf32>
    %33 = arith.truncf %32 : vector<16x128xf32> to vector<16x128xbf16>
    %cst_21 = arith.constant dense<0.000000e+00> : vector<16x8xf32>
    %34 = tpu.matmul %33, %19, %cst_21 {dimension_numbers = #tpu.dot_dimension_numbers<[1], [0], [0], [1], [0, 0, 1, 1], [], []>} : vector<16x128xbf16>, vector<128x8xbf16>, vector<16x8xf32> -> vector<16x8xf32>
    %35 = arith.truncf %34 : vector<16x8xf32> to vector<16x8xbf16>
    %c0_22 = arith.constant 0 : index
    %c0_23 = arith.constant 0 : index
    %c0_24 = arith.constant 0 : index
    %36 = vector.load %arg7[%c0_22, %c0_23, %c0_24] : memref<4x8x32xbf16, #tpu.memory_space<vmem>>, vector<1x8x32xbf16>
    %37 = vector.shape_cast %36 : vector<1x8x32xbf16> to vector<8x32xbf16>
    %cst_25 = arith.constant dense<0.000000e+00> : vector<16x32xf32>
    %38 = tpu.matmul %35, %37, %cst_25 {dimension_numbers = #tpu.dot_dimension_numbers<[1], [0], [0], [1], [0, 0, 1, 1], [], []>} : vector<16x8xbf16>, vector<8x32xbf16>, vector<16x32xf32> -> vector<16x32xf32>
    %c1 = arith.constant 1 : index
    %c0_26 = arith.constant 0 : index
    %c0_27 = arith.constant 0 : index
    %39 = vector.load %arg5[%c1, %c0_26, %c0_27] : memref<4x32x8xbf16, #tpu.memory_space<vmem>>, vector<1x32x8xbf16>
    %40 = vector.shape_cast %39 : vector<1x32x8xbf16> to vector<32x8xbf16>
    %cst_28 = arith.constant dense<0.000000e+00> : vector<16x8xf32>
    %41 = tpu.matmul %1, %40, %cst_28 {dimension_numbers = #tpu.dot_dimension_numbers<[1], [0], [0], [1], [0, 0, 1, 1], [], []>} : vector<16x32xbf16>, vector<32x8xbf16>, vector<16x8xf32> -> vector<16x8xf32>
    %c1_29 = arith.constant 1 : index
    %c0_30 = arith.constant 0 : index
    %c0_31 = arith.constant 0 : index
    %42 = vector.load %arg6[%c1_29, %c0_30, %c0_31] : memref<4x1x8xf32, #tpu.memory_space<vmem>>, vector<1x1x8xf32>
    %43 = vector.shape_cast %42 : vector<1x1x8xf32> to vector<1x8xf32>
    %44 = vector.broadcast %43 : vector<1x8xf32> to vector<16x8xf32>
    %45 = arith.addf %41, %44 : vector<16x8xf32>
    %46 = arith.truncf %45 : vector<16x8xf32> to vector<16x8xbf16>
    %c0_32 = arith.constant 0 : index
    %c1_33 = arith.constant 1 : index
    %c0_34 = arith.constant 0 : index
    %c0_35 = arith.constant 0 : index
    %47 = vector.load %arg3[%c0_32, %c1_33, %c0_34, %c0_35] : memref<1x4x128x8xbf16, #tpu.memory_space<vmem>>, vector<1x1x128x8xbf16>
    %48 = vector.shape_cast %47 : vector<1x1x128x8xbf16> to vector<128x8xbf16>
    %c0_36 = arith.constant 0 : index
    %c1_37 = arith.constant 1 : index
    %c0_38 = arith.constant 0 : index
    %c0_39 = arith.constant 0 : index
    %49 = vector.load %arg4[%c0_36, %c1_37, %c0_38, %c0_39] : memref<1x4x128x8xbf16, #tpu.memory_space<vmem>>, vector<1x1x128x8xbf16>
    %50 = vector.shape_cast %49 : vector<1x1x128x8xbf16> to vector<128x8xbf16>
    %cst_40 = arith.constant dense<0.000000e+00> : vector<16x128xf32>
    %51 = tpu.matmul %46, %48, %cst_40 {dimension_numbers = #tpu.dot_dimension_numbers<[1], [1], [0], [0], [0, 0, 1, 0], [], []>} : vector<16x8xbf16>, vector<128x8xbf16>, vector<16x128xf32> -> vector<16x128xf32>
    %52 = vector.broadcast %7 : vector<1x128xf32> to vector<16x128xf32>
    %53 = arith.addf %51, %52 : vector<16x128xf32>
    %cst_41 = arith.constant dense<0xFF800000> : vector<16xf32>
    %54 = vector.multi_reduction <maximumf>, %53, %cst_41 [1] : vector<16x128xf32> to vector<16xf32>
    %55 = vector.shape_cast %54 : vector<16xf32> to vector<16x1xf32>
    %56 = vector.broadcast %55 : vector<16x1xf32> to vector<16x128xf32>
    %57 = arith.subf %53, %56 : vector<16x128xf32>
    %58 = math.exp %57 : vector<16x128xf32>
    %cst_42 = arith.constant dense<0.000000e+00> : vector<16xf32>
    %59 = vector.multi_reduction <add>, %58, %cst_42 [1] : vector<16x128xf32> to vector<16xf32>
    %60 = vector.shape_cast %59 : vector<16xf32> to vector<16x1xf32>
    %61 = tpu.reciprocal %60 {approx = true} : vector<16x1xf32> -> vector<16x1xf32>
    %62 = vector.broadcast %61 : vector<16x1xf32> to vector<16x128xf32>
    %63 = arith.mulf %58, %62 : vector<16x128xf32>
    %64 = arith.truncf %63 : vector<16x128xf32> to vector<16x128xbf16>
    %cst_43 = arith.constant dense<0.000000e+00> : vector<16x8xf32>
    %65 = tpu.matmul %64, %50, %cst_43 {dimension_numbers = #tpu.dot_dimension_numbers<[1], [0], [0], [1], [0, 0, 1, 1], [], []>} : vector<16x128xbf16>, vector<128x8xbf16>, vector<16x8xf32> -> vector<16x8xf32>
    %66 = arith.truncf %65 : vector<16x8xf32> to vector<16x8xbf16>
    %c1_44 = arith.constant 1 : index
    %c0_45 = arith.constant 0 : index
    %c0_46 = arith.constant 0 : index
    %67 = vector.load %arg7[%c1_44, %c0_45, %c0_46] : memref<4x8x32xbf16, #tpu.memory_space<vmem>>, vector<1x8x32xbf16>
    %68 = vector.shape_cast %67 : vector<1x8x32xbf16> to vector<8x32xbf16>
    %cst_47 = arith.constant dense<0.000000e+00> : vector<16x32xf32>
    %69 = tpu.matmul %66, %68, %cst_47 {dimension_numbers = #tpu.dot_dimension_numbers<[1], [0], [0], [1], [0, 0, 1, 1], [], []>} : vector<16x8xbf16>, vector<8x32xbf16>, vector<16x32xf32> -> vector<16x32xf32>
    %70 = arith.addf %38, %69 : vector<16x32xf32>
    %c2 = arith.constant 2 : index
    %c0_48 = arith.constant 0 : index
    %c0_49 = arith.constant 0 : index
    %71 = vector.load %arg5[%c2, %c0_48, %c0_49] : memref<4x32x8xbf16, #tpu.memory_space<vmem>>, vector<1x32x8xbf16>
    %72 = vector.shape_cast %71 : vector<1x32x8xbf16> to vector<32x8xbf16>
    %cst_50 = arith.constant dense<0.000000e+00> : vector<16x8xf32>
    %73 = tpu.matmul %1, %72, %cst_50 {dimension_numbers = #tpu.dot_dimension_numbers<[1], [0], [0], [1], [0, 0, 1, 1], [], []>} : vector<16x32xbf16>, vector<32x8xbf16>, vector<16x8xf32> -> vector<16x8xf32>
    %c2_51 = arith.constant 2 : index
    %c0_52 = arith.constant 0 : index
    %c0_53 = arith.constant 0 : index
    %74 = vector.load %arg6[%c2_51, %c0_52, %c0_53] : memref<4x1x8xf32, #tpu.memory_space<vmem>>, vector<1x1x8xf32>
    %75 = vector.shape_cast %74 : vector<1x1x8xf32> to vector<1x8xf32>
    %76 = vector.broadcast %75 : vector<1x8xf32> to vector<16x8xf32>
    %77 = arith.addf %73, %76 : vector<16x8xf32>
    %78 = arith.truncf %77 : vector<16x8xf32> to vector<16x8xbf16>
    %c0_54 = arith.constant 0 : index
    %c2_55 = arith.constant 2 : index
    %c0_56 = arith.constant 0 : index
    %c0_57 = arith.constant 0 : index
    %79 = vector.load %arg3[%c0_54, %c2_55, %c0_56, %c0_57] : memref<1x4x128x8xbf16, #tpu.memory_space<vmem>>, vector<1x1x128x8xbf16>
    %80 = vector.shape_cast %79 : vector<1x1x128x8xbf16> to vector<128x8xbf16>
    %c0_58 = arith.constant 0 : index
    %c2_59 = arith.constant 2 : index
    %c0_60 = arith.constant 0 : index
    %c0_61 = arith.constant 0 : index
    %81 = vector.load %arg4[%c0_58, %c2_59, %c0_60, %c0_61] : memref<1x4x128x8xbf16, #tpu.memory_space<vmem>>, vector<1x1x128x8xbf16>
    %82 = vector.shape_cast %81 : vector<1x1x128x8xbf16> to vector<128x8xbf16>
    %cst_62 = arith.constant dense<0.000000e+00> : vector<16x128xf32>
    %83 = tpu.matmul %78, %80, %cst_62 {dimension_numbers = #tpu.dot_dimension_numbers<[1], [1], [0], [0], [0, 0, 1, 0], [], []>} : vector<16x8xbf16>, vector<128x8xbf16>, vector<16x128xf32> -> vector<16x128xf32>
    %84 = vector.broadcast %7 : vector<1x128xf32> to vector<16x128xf32>
    %85 = arith.addf %83, %84 : vector<16x128xf32>
    %cst_63 = arith.constant dense<0xFF800000> : vector<16xf32>
    %86 = vector.multi_reduction <maximumf>, %85, %cst_63 [1] : vector<16x128xf32> to vector<16xf32>
    %87 = vector.shape_cast %86 : vector<16xf32> to vector<16x1xf32>
    %88 = vector.broadcast %87 : vector<16x1xf32> to vector<16x128xf32>
    %89 = arith.subf %85, %88 : vector<16x128xf32>
    %90 = math.exp %89 : vector<16x128xf32>
    %cst_64 = arith.constant dense<0.000000e+00> : vector<16xf32>
    %91 = vector.multi_reduction <add>, %90, %cst_64 [1] : vector<16x128xf32> to vector<16xf32>
    %92 = vector.shape_cast %91 : vector<16xf32> to vector<16x1xf32>
    %93 = tpu.reciprocal %92 {approx = true} : vector<16x1xf32> -> vector<16x1xf32>
    %94 = vector.broadcast %93 : vector<16x1xf32> to vector<16x128xf32>
    %95 = arith.mulf %90, %94 : vector<16x128xf32>
    %96 = arith.truncf %95 : vector<16x128xf32> to vector<16x128xbf16>
    %cst_65 = arith.constant dense<0.000000e+00> : vector<16x8xf32>
    %97 = tpu.matmul %96, %82, %cst_65 {dimension_numbers = #tpu.dot_dimension_numbers<[1], [0], [0], [1], [0, 0, 1, 1], [], []>} : vector<16x128xbf16>, vector<128x8xbf16>, vector<16x8xf32> -> vector<16x8xf32>
    %98 = arith.truncf %97 : vector<16x8xf32> to vector<16x8xbf16>
    %c2_66 = arith.constant 2 : index
    %c0_67 = arith.constant 0 : index
    %c0_68 = arith.constant 0 : index
    %99 = vector.load %arg7[%c2_66, %c0_67, %c0_68] : memref<4x8x32xbf16, #tpu.memory_space<vmem>>, vector<1x8x32xbf16>
    %100 = vector.shape_cast %99 : vector<1x8x32xbf16> to vector<8x32xbf16>
    %cst_69 = arith.constant dense<0.000000e+00> : vector<16x32xf32>
    %101 = tpu.matmul %98, %100, %cst_69 {dimension_numbers = #tpu.dot_dimension_numbers<[1], [0], [0], [1], [0, 0, 1, 1], [], []>} : vector<16x8xbf16>, vector<8x32xbf16>, vector<16x32xf32> -> vector<16x32xf32>
    %102 = arith.addf %70, %101 : vector<16x32xf32>
    %c3 = arith.constant 3 : index
    %c0_70 = arith.constant 0 : index
    %c0_71 = arith.constant 0 : index
    %103 = vector.load %arg5[%c3, %c0_70, %c0_71] : memref<4x32x8xbf16, #tpu.memory_space<vmem>>, vector<1x32x8xbf16>
    %104 = vector.shape_cast %103 : vector<1x32x8xbf16> to vector<32x8xbf16>
    %cst_72 = arith.constant dense<0.000000e+00> : vector<16x8xf32>
    %105 = tpu.matmul %1, %104, %cst_72 {dimension_numbers = #tpu.dot_dimension_numbers<[1], [0], [0], [1], [0, 0, 1, 1], [], []>} : vector<16x32xbf16>, vector<32x8xbf16>, vector<16x8xf32> -> vector<16x8xf32>
    %c3_73 = arith.constant 3 : index
    %c0_74 = arith.constant 0 : index
    %c0_75 = arith.constant 0 : index
    %106 = vector.load %arg6[%c3_73, %c0_74, %c0_75] : memref<4x1x8xf32, #tpu.memory_space<vmem>>, vector<1x1x8xf32>
    %107 = vector.shape_cast %106 : vector<1x1x8xf32> to vector<1x8xf32>
    %108 = vector.broadcast %107 : vector<1x8xf32> to vector<16x8xf32>
    %109 = arith.addf %105, %108 : vector<16x8xf32>
    %110 = arith.truncf %109 : vector<16x8xf32> to vector<16x8xbf16>
    %c0_76 = arith.constant 0 : index
    %c3_77 = arith.constant 3 : index
    %c0_78 = arith.constant 0 : index
    %c0_79 = arith.constant 0 : index
    %111 = vector.load %arg3[%c0_76, %c3_77, %c0_78, %c0_79] : memref<1x4x128x8xbf16, #tpu.memory_space<vmem>>, vector<1x1x128x8xbf16>
    %112 = vector.shape_cast %111 : vector<1x1x128x8xbf16> to vector<128x8xbf16>
    %c0_80 = arith.constant 0 : index
    %c3_81 = arith.constant 3 : index
    %c0_82 = arith.constant 0 : index
    %c0_83 = arith.constant 0 : index
    %113 = vector.load %arg4[%c0_80, %c3_81, %c0_82, %c0_83] : memref<1x4x128x8xbf16, #tpu.memory_space<vmem>>, vector<1x1x128x8xbf16>
    %114 = vector.shape_cast %113 : vector<1x1x128x8xbf16> to vector<128x8xbf16>
    %cst_84 = arith.constant dense<0.000000e+00> : vector<16x128xf32>
    %115 = tpu.matmul %110, %112, %cst_84 {dimension_numbers = #tpu.dot_dimension_numbers<[1], [1], [0], [0], [0, 0, 1, 0], [], []>} : vector<16x8xbf16>, vector<128x8xbf16>, vector<16x128xf32> -> vector<16x128xf32>
    %116 = vector.broadcast %7 : vector<1x128xf32> to vector<16x128xf32>
    %117 = arith.addf %115, %116 : vector<16x128xf32>
    %cst_85 = arith.constant dense<0xFF800000> : vector<16xf32>
    %118 = vector.multi_reduction <maximumf>, %117, %cst_85 [1] : vector<16x128xf32> to vector<16xf32>
    %119 = vector.shape_cast %118 : vector<16xf32> to vector<16x1xf32>
    %120 = vector.broadcast %119 : vector<16x1xf32> to vector<16x128xf32>
    %121 = arith.subf %117, %120 : vector<16x128xf32>
    %122 = math.exp %121 : vector<16x128xf32>
    %cst_86 = arith.constant dense<0.000000e+00> : vector<16xf32>
    %123 = vector.multi_reduction <add>, %122, %cst_86 [1] : vector<16x128xf32> to vector<16xf32>
    %124 = vector.shape_cast %123 : vector<16xf32> to vector<16x1xf32>
    %125 = tpu.reciprocal %124 {approx = true} : vector<16x1xf32> -> vector<16x1xf32>
    %126 = vector.broadcast %125 : vector<16x1xf32> to vector<16x128xf32>
    %127 = arith.mulf %122, %126 : vector<16x128xf32>
    %128 = arith.truncf %127 : vector<16x128xf32> to vector<16x128xbf16>
    %cst_87 = arith.constant dense<0.000000e+00> : vector<16x8xf32>
    %129 = tpu.matmul %128, %114, %cst_87 {dimension_numbers = #tpu.dot_dimension_numbers<[1], [0], [0], [1], [0, 0, 1, 1], [], []>} : vector<16x128xbf16>, vector<128x8xbf16>, vector<16x8xf32> -> vector<16x8xf32>
    %130 = arith.truncf %129 : vector<16x8xf32> to vector<16x8xbf16>
    %c3_88 = arith.constant 3 : index
    %c0_89 = arith.constant 0 : index
    %c0_90 = arith.constant 0 : index
    %131 = vector.load %arg7[%c3_88, %c0_89, %c0_90] : memref<4x8x32xbf16, #tpu.memory_space<vmem>>, vector<1x8x32xbf16>
    %132 = vector.shape_cast %131 : vector<1x8x32xbf16> to vector<8x32xbf16>
    %cst_91 = arith.constant dense<0.000000e+00> : vector<16x32xf32>
    %133 = tpu.matmul %130, %132, %cst_91 {dimension_numbers = #tpu.dot_dimension_numbers<[1], [0], [0], [1], [0, 0, 1, 1], [], []>} : vector<16x8xbf16>, vector<8x32xbf16>, vector<16x32xf32> -> vector<16x32xf32>
    %134 = arith.addf %102, %133 : vector<16x32xf32>
    %c0_92 = arith.constant 0 : index
    %c0_93 = arith.constant 0 : index
    %135 = vector.load %arg8[%c0_92, %c0_93] : memref<1x32xf32, #tpu.memory_space<vmem>>, vector<1x32xf32>
    %136 = vector.shape_cast %135 : vector<1x32xf32> to vector<32xf32>
    %137 = vector.shape_cast %136 : vector<32xf32> to vector<1x32xf32>
    %138 = vector.broadcast %137 : vector<1x32xf32> to vector<16x32xf32>
    %139 = arith.addf %134, %138 : vector<16x32xf32>
    %c0_94 = arith.constant 0 : index
    %c0_95 = arith.constant 0 : index
    %c0_96 = arith.constant 0 : index
    %140 = vector.load %arg9[%c0_94, %c0_95, %c0_96] : memref<1x16x32xf32, #tpu.memory_space<vmem>>, vector<1x16x32xf32>
    %141 = vector.shape_cast %140 : vector<1x16x32xf32> to vector<16x32xf32>
    %142 = vector.shape_cast %139 : vector<16x32xf32> to vector<1x16x32xf32>
    tpu.vector_store %arg9[%c0_94, %c0_95, %c0_96], %142 {strides = array<i32>} : memref<1x16x32xf32, #tpu.memory_space<vmem>>, vector<1x16x32xf32>,
    return
  }
  func.func @transform_0(%arg0: i32, %arg1: i32) -> (i32, i32, i32) {
    %c0_i32 = arith.constant 0 : i32
    %c0_i32_0 = arith.constant 0 : i32
    return %arg0, %arg1, %c0_i32 : i32, i32, i32
  }
  func.func @transform_1(%arg0: i32, %arg1: i32) -> (i32, i32, i32, i32) {
    %c0_i32 = arith.constant 0 : i32
    %c0_i32_0 = arith.constant 0 : i32
    %c0_i32_1 = arith.constant 0 : i32
    %c0_i32_2 = arith.constant 0 : i32
    return %arg0, %c0_i32, %c0_i32_0, %c0_i32_1 : i32, i32, i32, i32
  }
  func.func @transform_2(%arg0: i32, %arg1: i32) -> (i32, i32, i32, i32) {
    %c0_i32 = arith.constant 0 : i32
    %c0_i32_0 = arith.constant 0 : i32
    %c0_i32_1 = arith.constant 0 : i32
    %c0_i32_2 = arith.constant 0 : i32
    return %arg0, %c0_i32, %c0_i32_0, %c0_i32_1 : i32, i32, i32, i32
  }
  func.func @transform_3(%arg0: i32, %arg1: i32) -> (i32, i32, i32) {
    %c0_i32 = arith.constant 0 : i32
    %c0_i32_0 = arith.constant 0 : i32
    %c0_i32_1 = arith.constant 0 : i32
    %c0_i32_2 = arith.constant 0 : i32
    return %c0_i32, %c0_i32_0, %c0_i32_1 : i32, i32, i32
  }
  func.func @transform_4(%arg0: i32, %arg1: i32) -> (i32, i32, i32) {
    %c0_i32 = arith.constant 0 : i32
    %c0_i32_0 = arith.constant 0 : i32
    %c0_i32_1 = arith.constant 0 : i32
    %c0_i32_2 = arith.constant 0 : i32
    return %c0_i32, %c0_i32_0, %c0_i32_1 : i32, i32, i32
  }
  func.func @transform_5(%arg0: i32, %arg1: i32) -> (i32, i32, i32) {
    %c0_i32 = arith.constant 0 : i32
    %c0_i32_0 = arith.constant 0 : i32
    %c0_i32_1 = arith.constant 0 : i32
    %c0_i32_2 = arith.constant 0 : i32
    return %c0_i32, %c0_i32_0, %c0_i32_1 : i32, i32, i32
  }
  func.func @transform_6(%arg0: i32, %arg1: i32) -> (i32, i32) {
    %c0_i32 = arith.constant 0 : i32
    %c0_i32_0 = arith.constant 0 : i32
    %c0_i32_1 = arith.constant 0 : i32
    return %c0_i32, %c0_i32_0 : i32, i32
  }
  func.func @transform_7(%arg0: i32, %arg1: i32) -> (i32, i32, i32) {
    %c0_i32 = arith.constant 0 : i32
    %c0_i32_0 = arith.constant 0 : i32
    return %arg0, %arg1, %c0_i32 : i32, i32, i32
  }
}

</mosaic_0001>

<llo_original>
// kernel: tpu_custom_call.1
$region0: #{tpu_custom_call.1}
  #allocation0 [shape = 'u32[]', space=smem, size = 0x4, offset = 0x4, fixed_abs, tag = 'smem constant byte address 0x4 - core index']
  #allocation1 [shape = 'u32[144,128]{1,0:T(1,128)}', space=vmem, size = 0x12000, scoped, tag = 'internal scratch']
  %s0 = inlined_call_operand.vmem [shape: bf16[2,16,32], index: 0, kind: input, shape index: {}]
  %s1 = inlined_call_operand.vmem [shape: bf16[2,4,128,8], index: 1, kind: input, shape index: {}]
  %s2 = inlined_call_operand.vmem [shape: bf16[2,4,128,8], index: 2, kind: input, shape index: {}]
  %s3 = inlined_call_operand.vmem [shape: bf16[4,32,8], index: 3, kind: input, shape index: {}]
  %s4 = inlined_call_operand.vmem [shape: f32[4,1,8], index: 4, kind: input, shape index: {}]
  %s5 = inlined_call_operand.vmem [shape: bf16[4,8,32], index: 5, kind: input, shape index: {}]
  %s6 = inlined_call_operand.vmem [shape: f32[1,32], index: 6, kind: input, shape index: {}]
  %s7 = inlined_call_operand.hbm [shape: f32[2,16,32], index: 7, kind: output, shape index: {}]
  %s8 = sld [smem:[#allocation0]]
  $region61: #{tpu_custom_call.1} parent=0
    _
  %s10 = ssub.s32 1, %s8
  %s11 = scalar_select 0, %s10, %s8
  $region1: #{tpu_custom_call.1} parent=0
    #allocation2 [shape = 'u8[16384]{0}', space=vmem, size = 0x4000, scoped, tag = 'output window, operand 0']
    #allocation3 [shape = 's32[2]{0}', space=sflag, size = 0x8, scoped, tag = 'scoped memory for tpu_custom_call.1']
    %12 = vsyncpa [#allocation3], 0
    %s13 = scalar_lea.sflag [#allocation3], 1
    %14 = vsyncpa %s13, 0
    loop: start=0, step=1, limit=4
    $region2: #{tpu_custom_call.1} parent=1 // loop_pre_header
      _
    $region3: #{tpu_custom_call.1} parent=1 // loop_header
      %s16 = sphi 0, %s20
      %p17 = scmp.ge.s32.totalorder %s16, 4
      %s23 = sphi 0, %s35
      %s24 = sphi 0, %s31
      %s25 = sphi 0, %s23
      %s26 = sphi 0, %s24
      %s27 = sphi 0, %s25
      %s28 = sphi 0, %s26
      %s40 = sphi 0, %s42
      %s43 = sphi 0, %s40
      %s44 = sphi 0, %s43
      %s60 = sphi 0, %s44
      %s66 = sphi 0, %s68
      %s69 = sphi 0, %s66
      %s70 = sphi 0, %s69
      %s86 = sphi 0, %s70
      %s92 = sphi 0, %s94
      %s95 = sphi 0, %s92
      %s96 = sphi 0, %s95
      %s112 = sphi 0, %s96
      %s116 = sphi 0, %s116
      %s118 = sphi 0, %s116
      %s119 = sphi 0, %s118
      %s133 = sphi 0, %s119
      %s137 = sphi 0, %s137
      %s139 = sphi 0, %s137
      %s140 = sphi 0, %s139
      %s154 = sphi 0, %s140
      %s158 = sphi 0, %s158
      %s160 = sphi 0, %s158
      %s161 = sphi 0, %s160
      %s175 = sphi 0, %s161
      %s179 = sphi 0, %s179
      %s181 = sphi 0, %s179
      %s182 = sphi 0, %s181
      %s196 = sphi 0, %s182
      %s204 = sphi 0, %s206
      %s207 = sphi 0, %s204
      %s208 = sphi 0, %s207
      %s224 = sphi 0, %s208
    $region4: #{tpu_custom_call.1} parent=1 // loop_header_branch
      %19 = sbr.rel (%p17) target = $region8
    $region5: #{tpu_custom_call.1} parent=1 // loop_body
      %s21 = ssub.s32 %s16, 1
      %s22 = ssub.s32 %s16, 2
      %s29 = sadd.s32 1, %s24
      %p30 = scmp.ge.s32.totalorder %s29, 1
      %s31 = scalar_select %p30, 0, %s29
      %s32 = sadd.s32 1, %s23
      %s33 = scalar_select %p30, %s32, %s23
      %p34 = scmp.ge.s32.totalorder %s33, 2
      %s35 = scalar_select %p34, 0, %s33
      %s36 = ssub.s32 %s23, %s35
      %s37 = ssub.s32 %s24, %s31
      %s38 = sor.u32 %s36, %s37
      %p39 = scmp.eq.s32.totalorder %s38, 0
      %s41 = sadd.s32 %s40, 1
      %s42 = scalar_select %p39, %s40, %s41
      %p45 = pneg %p39
      %p46 = scmp.eq.s32.totalorder %s16, 1
      %p47 = por %p45, %p46
      %p48 = scmp.ne.s32.totalorder %s40, %s43
      %p49 = scmp.eq.s32.totalorder %s16, 0
      %p50 = por %p48, %p49
      %p51 = scmp.ne.s32.totalorder %s40, %s43
      %p52 = scmp.eq.s32.totalorder %s21, 1
      %p53 = por %p51, %p52
      %p54 = scmp.ne.s32.totalorder %s43, %s44
      %p55 = scmp.eq.s32.totalorder %s21, 0
      %p56 = por %p54, %p55
      %p57 = scmp.ne.s32.totalorder %s43, %s44
      %p58 = scmp.eq.s32.totalorder %s22, 1
      %p59 = por %p57, %p58
      %p61 = scmp.ne.s32.totalorder %s44, %s60
      %p62 = scmp.eq.s32.totalorder %s22, 0
      %p63 = por %p61, %p62
      %s64 = ssub.s32 %s23, %s35
      %p65 = scmp.eq.s32.totalorder %s64, 0
      %s67 = sadd.s32 %s66, 1
      %s68 = scalar_select %p65, %s66, %s67
      %p71 = pneg %p65
      %p72 = scmp.eq.s32.totalorder %s16, 1
      %p73 = por %p71, %p72
      %p74 = scmp.ne.s32.totalorder %s66, %s69
      %p75 = scmp.eq.s32.totalorder %s16, 0
      %p76 = por %p74, %p75
      %p77 = scmp.ne.s32.totalorder %s66, %s69
      %p78 = scmp.eq.s32.totalorder %s21, 1
      %p79 = por %p77, %p78
      %p80 = scmp.ne.s32.totalorder %s69, %s70
      %p81 = scmp.eq.s32.totalorder %s21, 0
      %p82 = por %p80, %p81
      %p83 = scmp.ne.s32.totalorder %s69, %s70
      %p84 = scmp.eq.s32.totalorder %s22, 1
      %p85 = por %p83, %p84
      %p87 = scmp.ne.s32.totalorder %s70, %s86
      %p88 = scmp.eq.s32.totalorder %s22, 0
      %p89 = por %p87, %p88
      %s90 = ssub.s32 %s23, %s35
      %p91 = scmp.eq.s32.totalorder %s90, 0
      %s93 = sadd.s32 %s92, 1
      %s94 = scalar_select %p91, %s92, %s93
      %p97 = pneg %p91
      %p98 = scmp.eq.s32.totalorder %s16, 1
      %p99 = por %p97, %p98
      %p100 = scmp.ne.s32.totalorder %s92, %s95
      %p101 = scmp.eq.s32.totalorder %s16, 0
      %p102 = por %p100, %p101
      %p103 = scmp.ne.s32.totalorder %s92, %s95
      %p104 = scmp.eq.s32.totalorder %s21, 1
      %p105 = por %p103, %p104
      %p106 = scmp.ne.s32.totalorder %s95, %s96
      %p107 = scmp.eq.s32.totalorder %s21, 0
      %p108 = por %p106, %p107
      %p109 = scmp.ne.s32.totalorder %s95, %s96
      %p110 = scmp.eq.s32.totalorder %s22, 1
      %p111 = por %p109, %p110
      %p113 = scmp.ne.s32.totalorder %s96, %s112
      %p114 = scmp.eq.s32.totalorder %s22, 0
      %p115 = por %p113, %p114
      %s117 = sadd.s32 %s116, 1
      %p120 = scmp.eq.s32.totalorder %s16, 1
      %p121 = scmp.ne.s32.totalorder %s116, %s118
      %p122 = scmp.eq.s32.totalorder %s16, 0
      %p123 = por %p121, %p122
      %p124 = scmp.ne.s32.totalorder %s116, %s118
      %p125 = scmp.eq.s32.totalorder %s21, 1
      %p126 = por %p124, %p125
      %p127 = scmp.ne.s32.totalorder %s118, %s119
      %p128 = scmp.eq.s32.totalorder %s21, 0
      %p129 = por %p127, %p128
      %p130 = scmp.ne.s32.totalorder %s118, %s119
      %p131 = scmp.eq.s32.totalorder %s22, 1
      %p132 = por %p130, %p131
      %p134 = scmp.ne.s32.totalorder %s119, %s133
      %p135 = scmp.eq.s32.totalorder %s22, 0
      %p136 = por %p134, %p135
      %s138 = sadd.s32 %s137, 1
      %p141 = scmp.eq.s32.totalorder %s16, 1
      %p142 = scmp.ne.s32.totalorder %s137, %s139
      %p143 = scmp.eq.s32.totalorder %s16, 0
      %p144 = por %p142, %p143
      %p145 = scmp.ne.s32.totalorder %s137, %s139
      %p146 = scmp.eq.s32.totalorder %s21, 1
      %p147 = por %p145, %p146
      %p148 = scmp.ne.s32.totalorder %s139, %s140
      %p149 = scmp.eq.s32.totalorder %s21, 0
      %p150 = por %p148, %p149
      %p151 = scmp.ne.s32.totalorder %s139, %s140
      %p152 = scmp.eq.s32.totalorder %s22, 1
      %p153 = por %p151, %p152
      %p155 = scmp.ne.s32.totalorder %s140, %s154
      %p156 = scmp.eq.s32.totalorder %s22, 0
      %p157 = por %p155, %p156
      %s159 = sadd.s32 %s158, 1
      %p162 = scmp.eq.s32.totalorder %s16, 1
      %p163 = scmp.ne.s32.totalorder %s158, %s160
      %p164 = scmp.eq.s32.totalorder %s16, 0
      %p165 = por %p163, %p164
      %p166 = scmp.ne.s32.totalorder %s158, %s160
      %p167 = scmp.eq.s32.totalorder %s21, 1
      %p168 = por %p166, %p167
      %p169 = scmp.ne.s32.totalorder %s160, %s161
      %p170 = scmp.eq.s32.totalorder %s21, 0
      %p171 = por %p169, %p170
      %p172 = scmp.ne.s32.totalorder %s160, %s161
      %p173 = scmp.eq.s32.totalorder %s22, 1
      %p174 = por %p172, %p173
      %p176 = scmp.ne.s32.totalorder %s161, %s175
      %p177 = scmp.eq.s32.totalorder %s22, 0
      %p178 = por %p176, %p177
      %s180 = sadd.s32 %s179, 1
      %p183 = scmp.eq.s32.totalorder %s16, 1
      %p184 = scmp.ne.s32.totalorder %s179, %s181
      %p185 = scmp.eq.s32.totalorder %s16, 0
      %p186 = por %p184, %p185
      %p187 = scmp.ne.s32.totalorder %s179, %s181
      %p188 = scmp.eq.s32.totalorder %s21, 1
      %p189 = por %p187, %p188
      %p190 = scmp.ne.s32.totalorder %s181, %s182
      %p191 = scmp.eq.s32.totalorder %s21, 0
      %p192 = por %p190, %p191
      %p193 = scmp.ne.s32.totalorder %s181, %s182
      %p194 = scmp.eq.s32.totalorder %s22, 1
      %p195 = por %p193, %p194
      %p197 = scmp.ne.s32.totalorder %s182, %s196
      %p198 = scmp.eq.s32.totalorder %s22, 0
      %p199 = por %p197, %p198
      %s200 = ssub.s32 %s23, %s35
      %s201 = ssub.s32 %s24, %s31
      %s202 = sor.u32 %s200, %s201
      %p203 = scmp.eq.s32.totalorder %s202, 0
      %s205 = sadd.s32 %s204, 1
      %s206 = scalar_select %p203, %s204, %s205
      %p209 = pneg %p203
      %p210 = scmp.eq.s32.totalorder %s16, 1
      %p211 = por %p209, %p210
      %p212 = scmp.ne.s32.totalorder %s204, %s207
      %p213 = scmp.eq.s32.totalorder %s16, 0
      %p214 = por %p212, %p213
      %p215 = scmp.ne.s32.totalorder %s204, %s207
      %p216 = scmp.eq.s32.totalorder %s21, 1
      %p217 = por %p215, %p216
      %p218 = scmp.ne.s32.totalorder %s207, %s208
      %p219 = scmp.eq.s32.totalorder %s21, 0
      %p220 = por %p218, %p219
      %p221 = scmp.ne.s32.totalorder %s207, %s208
      %p222 = scmp.eq.s32.totalorder %s22, 1
      %p223 = por %p221, %p222
      %p225 = scmp.ne.s32.totalorder %s208, %s224
      %p226 = scmp.eq.s32.totalorder %s22, 0
      %p227 = por %p225, %p226
      %p228 = scmp.le.s32.totalorder 1, %s16
      %p229 = scmp.lt.s32.totalorder %s16, 3
      %p230 = pnand %p228, %p229
      %p231 = pneg %p230
      // Predicated region
      $region9: #{tpu_custom_call.1} parent=5 // pred_check
        _
      $region10: #{tpu_custom_call.1} parent=5 // pred_check_branch
        %233 = sbr.rel (%p230) target = $region12
      $region11: #{tpu_custom_call.1} parent=5 // pred_region
        %s234 = ssub.s32 %s16, 1
        // Predicated region
        $region13: #{tpu_custom_call.1} parent=11 // pred_check
          %p235 = pneg %p129
        $region14: #{tpu_custom_call.1} parent=11 // pred_check_branch
          %237 = sbr.rel (%p235) target = $region16
        $region15: #{tpu_custom_call.1} parent=11 // pred_region
          _
        $region16: #{tpu_custom_call.1} parent=11 // pred_fallthru
          _
        // Predicated region
        $region17: #{tpu_custom_call.1} parent=11 // pred_check
          %p238 = pneg %p150
        $region18: #{tpu_custom_call.1} parent=11 // pred_check_branch
          %240 = sbr.rel (%p238) target = $region20
        $region19: #{tpu_custom_call.1} parent=11 // pred_region
          _
        $region20: #{tpu_custom_call.1} parent=11 // pred_fallthru
          _
        // Predicated region
        $region21: #{tpu_custom_call.1} parent=11 // pred_check
          %p241 = pneg %p171
        $region22: #{tpu_custom_call.1} parent=11 // pred_check_branch
          %243 = sbr.rel (%p241) target = $region24
        $region23: #{tpu_custom_call.1} parent=11 // pred_region
          _
        $region24: #{tpu_custom_call.1} parent=11 // pred_fallthru
          _
        // Predicated region
        $region25: #{tpu_custom_call.1} parent=11 // pred_check
          %p244 = pneg %p192
        $region26: #{tpu_custom_call.1} parent=11 // pred_check_branch
          %246 = sbr.rel (%p244) target = $region28
        $region27: #{tpu_custom_call.1} parent=11 // pred_region
          _
        $region28: #{tpu_custom_call.1} parent=11 // pred_fallthru
          _
      $region12: #{tpu_custom_call.1} parent=5 // pred_fallthru
        _
      %p247 = scmp.lt.s32.totalorder %s16, 2
      // Predicated region
      $region29: #{tpu_custom_call.1} parent=5 // pred_check
        %p248 = pneg %p247
      $region30: #{tpu_custom_call.1} parent=5 // pred_check_branch
        %250 = sbr.rel (%p248) target = $region32
      $region31: #{tpu_custom_call.1} parent=5 // pred_region
        // Predicated region
        $region33: #{tpu_custom_call.1} parent=31 // pred_check
          %p251 = pneg %p50
        $region34: #{tpu_custom_call.1} parent=31 // pred_check_branch
          %253 = sbr.rel (%p251) target = $region36
        $region35: #{tpu_custom_call.1} parent=31 // pred_region
          %s254 = smul.u32 2, %s24
          %p255 = scmp.lt.s32.totalorder %s23, 1
          %s256 = scalar_select %p255, %s23, 1
          %p257 = scmp.lt.s32.totalorder %s254, 1
          %s258 = scalar_select %p257, %s254, 1
          %s259 = smul.addr %s256, 2
          %s260 = sadd.s32 %s258, %s259
          %s261 = smul.addr %s260, 4
          %s262 = scalar_lea.vmem %s0, %s261
          %s263 = smul.u32 2, %s24
        $region36: #{tpu_custom_call.1} parent=31 // pred_fallthru
          _
        // Predicated region
        $region37: #{tpu_custom_call.1} parent=31 // pred_check
          %p264 = pneg %p76
        $region38: #{tpu_custom_call.1} parent=31 // pred_check_branch
          %266 = sbr.rel (%p264) target = $region40
        $region39: #{tpu_custom_call.1} parent=31 // pred_region
          %p267 = scmp.lt.s32.totalorder %s23, 1
          %s268 = scalar_select %p267, %s23, 1
          %s269 = smul.addr %s268, 64
          %s270 = smul.addr %s269, 4
          %s271 = scalar_lea.vmem %s1, %s270
        $region40: #{tpu_custom_call.1} parent=31 // pred_fallthru
          _
        // Predicated region
        $region41: #{tpu_custom_call.1} parent=31 // pred_check
          %p272 = pneg %p102
        $region42: #{tpu_custom_call.1} parent=31 // pred_check_branch
          %274 = sbr.rel (%p272) target = $region44
        $region43: #{tpu_custom_call.1} parent=31 // pred_region
          %p275 = scmp.lt.s32.totalorder %s23, 1
          %s276 = scalar_select %p275, %s23, 1
          %s277 = smul.addr %s276, 64
          %s278 = smul.addr %s277, 4
          %s279 = scalar_lea.vmem %s2, %s278
        $region44: #{tpu_custom_call.1} parent=31 // pred_fallthru
          _
      $region32: #{tpu_custom_call.1} parent=5 // pred_fallthru
        _
      %p280 = scmp.le.s32.totalorder 1, %s16
      %p281 = scmp.lt.s32.totalorder %s16, 3
      %p282 = pnand %p280, %p281
      %p283 = pneg %p282
      // Predicated region
      $region45: #{tpu_custom_call.1} parent=5 // pred_check
        _
      $region46: #{tpu_custom_call.1} parent=5 // pred_check_branch
        %285 = sbr.rel (%p282) target = $region48
      $region47: #{tpu_custom_call.1} parent=5 // pred_region
        %s286 = ssub.s32 %s16, 1
        %s287 = smul.u32 2, %s26
        %p288 = scmp.lt.s32.totalorder %s25, 1
        %s289 = scalar_select %p288, %s25, 1
        %p290 = scmp.lt.s32.totalorder %s287, 1
        %s291 = scalar_select %p290, %s287, 1
        %s292 = smul.addr %s289, 2
        %s293 = sadd.s32 %s291, %s292
        %s294 = smul.addr %s293, 4
        %s295 = scalar_lea.vmem %s0, %s294
        %p296 = pneg %p56
        %p297 = pneg %p53
        %p298 = scmp.lt.s32.totalorder %s25, 1
        %s299 = scalar_select %p298, %s25, 1
        %s300 = smul.addr %s299, 64
        %s301 = smul.addr %s300, 4
        %s302 = scalar_lea.vmem %s1, %s301
        %p303 = pneg %p82
        %p304 = pneg %p79
        %p305 = scmp.lt.s32.totalorder %s25, 1
        %s306 = scalar_select %p305, %s25, 1
        %s307 = smul.addr %s306, 64
        %s308 = smul.addr %s307, 4
        %s309 = scalar_lea.vmem %s2, %s308
        %p310 = pneg %p108
        %p311 = pneg %p105
        %p312 = pneg %p129
        %p313 = pneg %p126
        %p314 = pneg %p150
        %p315 = pneg %p147
        %p316 = pneg %p171
        %p317 = pneg %p168
        %p318 = pneg %p192
        %p319 = pneg %p189
        %p320 = pneg %p220
        %p321 = pneg %p217
        %s322 = sand.u32 %s207, 1
        %s323 = scalar_lea.sflag [#allocation3], %s322
        %s324 = sand.u32 %s207, 1
        %s325 = smul.addr %s324, 16
        %s326 = scalar_lea.vmem [#allocation2], %s325
        %s327 = smul.u32 2, %s26
        %p328 = scmp.lt.s32.totalorder %s25, 1
        %s329 = scalar_select %p328, %s25, 1
        %p330 = scmp.lt.s32.totalorder %s327, 1
        %s331 = scalar_select %p330, %s327, 1
        %s332 = smul.addr %s329, 2
        %s333 = sadd.s32 %s331, %s332
        %s334 = smul.addr %s333, 4
        %s335 = scalar_lea.vmem %s0, %s334
        %s336 = smul.u32 2, %s26
        %p337 = scmp.lt.s32.totalorder %s25, 1
        %s338 = scalar_select %p337, %s25, 1
        %s339 = smul.addr %s338, 64
        %s340 = smul.addr %s339, 4
        %s341 = scalar_lea.vmem %s1, %s340
        %p342 = scmp.lt.s32.totalorder %s25, 1
        %s343 = scalar_select %p342, %s25, 1
        %s344 = smul.addr %s343, 64
        %s345 = smul.addr %s344, 4
        %s346 = scalar_lea.vmem %s2, %s345
        %s347 = smul.u32 2, %s26
        %v349 = vld [vmem:[%s335] sm:$0xf]
        %v350 = vld [vmem:[%s335 + $0x4] sm:$0xf]
        %v351 = vlaneseq
        %v352 = vand.u32 %v351, 127
        %vm353 = vcmp.lt.s32.totalorder %v352, 8
        %v354 = vsel %vm353, 0.0, -1e+30
        %v355 = vld [vmem:[%s3] sm:$0xf]
        %v356 = vld [vmem:[%s3 + $0x4] sm:$0xf]
        %v357 = vld [vmem:[%s3 + $0x8] sm:$0xf]
        %v358 = vld [vmem:[%s3 + $0xc] sm:$0xf]
        %v359 = vld [vmem:[%s4] sm:$0x1]
        %v361 = vlaneseq
        %v362 = vshrl.u32 %v361, 7
        %v363 = vsub.s32 0, %v362
        %v364 = vrot.slane %v359, %v363
        %v368 = vunpack.c.l.b16 %v349
        %v369 = vunpack.c.l.b16 %v350
        %v370 = vpack.c.b16 %v369, %v368
        %v375 = vunpack.c.l.b16 %v355
        %v376 = vunpack.c.l.b16 %v356
        %v377 = vunpack.c.l.b16 %v357
        %v378 = vunpack.c.l.b16 %v358
        %v379 = vpack.c.b16 %v376, %v375
        %v380 = vpack.c.b16 %v378, %v377
        %vm383 = vcmask 261120
        %v385 = vsel %vm383, %v370, 0
        %387 = vmatprep.subr.bf16.mxu0 0
        %388 = vmatpush1.bf16.msra.mxu0 %v379
        %389 = vmatprep.subr.bf16.mxu0 0
        %390 = vmatpush1.bf16.msra.mxu0 %v380
        %391 = vmatprep.subr.bf16.mxu0 0
        %392 = vmatpush1.bf16.msra.mxu0 0
        %393 = vmatprep.subr.bf16.mxu0 0
        %394 = vmatpush1.bf16.msra.mxu0 0
        %395 = vmatprep.subr.bf16.mxu0 0
        %396 = vmatpush1.bf16.msra.mxu0 0
        %397 = vmatprep.subr.bf16.mxu0 0
        %398 = vmatpush1.bf16.msra.mxu0 0
        %399 = vmatprep.subr.bf16.mxu0 0
        %400 = vmatpush1.bf16.msra.mxu0 0
        %401 = vmatprep.subr.bf16.mxu0 0
        %402 = vmatpush1.bf16.msra.mxu0 0
        %403 = vmatprep.subr.bf16.mxu0 0
        %404 = vmatpush1.bf16.msra.mxu0 0
        %405 = vmatprep.subr.bf16.mxu0 0
        %406 = vmatpush1.bf16.msra.mxu0 0
        %407 = vmatprep.subr.bf16.mxu0 0
        %408 = vmatpush1.bf16.msra.mxu0 0
        %409 = vmatprep.subr.bf16.mxu0 0
        %410 = vmatpush1.bf16.msra.mxu0 0
        %411 = vmatprep.subr.bf16.mxu0 0
        %412 = vmatpush1.bf16.msra.mxu0 0
        %413 = vmatprep.subr.bf16.mxu0 0
        %414 = vmatpush1.bf16.msra.mxu0 0
        %415 = vmatprep.subr.bf16.mxu0 0
        %416 = vmatpush1.bf16.msra.mxu0 0
        %417 = vmatprep.subr.bf16.mxu0 0
        %418 = vmatpush1.bf16.msra.mxu0 0
        %419 = vmatprep.mubr.bf16.mxu0 0
        %420 = vmatmul.mubr.bf16.gmra.mrb[0].mxu0 %v385
        %v421 = vpop.f32.mrb[0].mxu0
        %v422 = vadd.f32 %v364, %v421
        %v423 = vpop.f32.mrb[0].mxu0
        %v424 = vpop.f32.mrb[0].mxu0
        %v425 = vadd.f32 %v364, %v424
        %v426 = vpop.f32.mrb[0].mxu0
        %427 = vdwg.mxu0
        %v428 = vpack.c.bf16 %v425, %v422
        %v429 = vld [vmem:[%s341] sm:$0xf]
        %v430 = vld [vmem:[%s341 + $0x4] sm:$0xf]
        %v431 = vld [vmem:[%s341 + $0x8] sm:$0xf]
        %v432 = vld [vmem:[%s341 + $0xc] sm:$0xf]
        %v433 = vld [vmem:[%s341 + $0x10] sm:$0xf]
        %v434 = vld [vmem:[%s341 + $0x14] sm:$0xf]
        %v435 = vld [vmem:[%s341 + $0x18] sm:$0xf]
        %v436 = vld [vmem:[%s341 + $0x1c] sm:$0xf]
        %v437 = vld [vmem:[%s341 + $0x20] sm:$0xf]
        %v438 = vld [vmem:[%s341 + $0x24] sm:$0xf]
        %v439 = vld [vmem:[%s341 + $0x28] sm:$0xf]
        %v440 = vld [vmem:[%s341 + $0x2c] sm:$0xf]
        %v441 = vld [vmem:[%s341 + $0x30] sm:$0xf]
        %v442 = vld [vmem:[%s341 + $0x34] sm:$0xf]
        %v443 = vld [vmem:[%s341 + $0x38] sm:$0xf]
        %v444 = vld [vmem:[%s341 + $0x3c] sm:$0xf]
        %v445 = vld [vmem:[%s346] sm:$0xf]
        %v446 = vld [vmem:[%s346 + $0x4] sm:$0xf]
        %v447 = vld [vmem:[%s346 + $0x8] sm:$0xf]
        %v448 = vld [vmem:[%s346 + $0xc] sm:$0xf]
        %v449 = vld [vmem:[%s346 + $0x10] sm:$0xf]
        %v450 = vld [vmem:[%s346 + $0x14] sm:$0xf]
        %v451 = vld [vmem:[%s346 + $0x18] sm:$0xf]
        %v452 = vld [vmem:[%s346 + $0x1c] sm:$0xf]
        %v453 = vld [vmem:[%s346 + $0x20] sm:$0xf]
        %v454 = vld [vmem:[%s346 + $0x24] sm:$0xf]
        %v455 = vld [vmem:[%s346 + $0x28] sm:$0xf]
        %v456 = vld [vmem:[%s346 + $0x2c] sm:$0xf]
        %v457 = vld [vmem:[%s346 + $0x30] sm:$0xf]
        %v458 = vld [vmem:[%s346 + $0x34] sm:$0xf]
        %v459 = vld [vmem:[%s346 + $0x38] sm:$0xf]
        %v460 = vld [vmem:[%s346 + $0x3c] sm:$0xf]
        %v477 = vunpack.c.l.b16 %v429
        %v478 = vunpack.c.l.b16 %v430
        %v479 = vunpack.c.l.b16 %v431
        %v480 = vunpack.c.l.b16 %v432
        %v481 = vunpack.c.l.b16 %v433
        %v482 = vunpack.c.l.b16 %v434
        %v483 = vunpack.c.l.b16 %v435
        %v484 = vunpack.c.l.b16 %v436
        %v485 = vunpack.c.l.b16 %v437
        %v486 = vunpack.c.l.b16 %v438
        %v487 = vunpack.c.l.b16 %v439
        %v488 = vunpack.c.l.b16 %v440
        %v489 = vunpack.c.l.b16 %v441
        %v490 = vunpack.c.l.b16 %v442
        %v491 = vunpack.c.l.b16 %v443
        %v492 = vunpack.c.l.b16 %v444
        %v493 = vpack.c.b16 %v478, %v477
        %v494 = vpack.c.b16 %v480, %v479
        %v495 = vpack.c.b16 %v482, %v481
        %v496 = vpack.c.b16 %v484, %v483
        %v497 = vpack.c.b16 %v486, %v485
        %v498 = vpack.c.b16 %v488, %v487
        %v499 = vpack.c.b16 %v490, %v489
        %v500 = vpack.c.b16 %v492, %v491
        %vm501 = vcmask 64512
        %v503 = vsel %vm501, %v428, 0
        %v506 = vsel %vm501, %v493, 0
        %v509 = vsel %vm501, %v494, 0
        %v512 = vsel %vm501, %v495, 0
        %v515 = vsel %vm501, %v496, 0
        %v518 = vsel %vm501, %v497, 0
        %v521 = vsel %vm501, %v498, 0
        %v524 = vsel %vm501, %v499, 0
        %v527 = vsel %vm501, %v500, 0
        %529 = vmatprep.subr.bf16.mxu0 0
        %530 = vmatpush1.bf16.xpose.msra.mxu0 %v506
        %531 = vmatprep.subr.bf16.mxu0 0
        %532 = vmatpush1.bf16.xpose.msra.mxu0 %v509
        %533 = vmatprep.subr.bf16.mxu0 0
        %534 = vmatpush1.bf16.xpose.msra.mxu0 %v512
        %535 = vmatprep.subr.bf16.mxu0 0
        %536 = vmatpush1.bf16.xpose.msra.mxu0 %v515
        %537 = vmatprep.subr.bf16.mxu0 0
        %538 = vmatpush1.bf16.xpose.msra.mxu0 %v518
        %539 = vmatprep.subr.bf16.mxu0 0
        %540 = vmatpush1.bf16.xpose.msra.mxu0 %v521
        %541 = vmatprep.subr.bf16.mxu0 0
        %542 = vmatpush1.bf16.xpose.msra.mxu0 %v524
        %543 = vmatprep.subr.bf16.mxu0 0
        %544 = vmatpush1.bf16.xpose.msra.mxu0 %v527
        %545 = vmatprep.subr.bf16.mxu0 0
        %546 = vmatpush1.bf16.xpose.msra.mxu0 0
        %547 = vmatprep.subr.bf16.mxu0 0
        %548 = vmatpush1.bf16.xpose.msra.mxu0 0
        %549 = vmatprep.subr.bf16.mxu0 0
        %550 = vmatpush1.bf16.xpose.msra.mxu0 0
        %551 = vmatprep.subr.bf16.mxu0 0
        %552 = vmatpush1.bf16.xpose.msra.mxu0 0
        %553 = vmatprep.subr.bf16.mxu0 0
        %554 = vmatpush1.bf16.xpose.msra.mxu0 0
        %555 = vmatprep.subr.bf16.mxu0 0
        %556 = vmatpush1.bf16.xpose.msra.mxu0 0
        %557 = vmatprep.subr.bf16.mxu0 0
        %558 = vmatpush1.bf16.xpose.msra.mxu0 0
        %559 = vmatprep.subr.bf16.mxu0 0
        %560 = vmatpush1.bf16.xpose.msra.mxu0 0
        %561 = vmatprep.mubr.bf16.mxu0 0
        %562 = vmatmul.mubr.bf16.gmra.mrb[0].mxu0 %v503
        %v563 = vpop.f32.mrb[0].mxu0
        %v564 = vadd.f32 %v354, %v563
        %v565 = vpop.f32.mrb[0].mxu0
        %v566 = vpop.f32.mrb[0].mxu0
        %v567 = vadd.f32 %v354, %v566
        %v568 = vpop.f32.mrb[0].mxu0
        %569 = vdwg.mxu0
        %570 = vmax.xlane.f32.xlu0 %v564
        %v571 = vpop.xlane.xlu0 %570
        %572 = vmax.xlane.f32.xlu0 %v567
        %v573 = vpop.xlane.xlu0 %572
        %v574 = vsub.f32 %v564, %v571
        %v575 = vsub.f32 %v567, %v573
        %v576 = vmul.f32 %v574, 1.442695
        %v577 = vpow.pop %v576
        %v578 = vmul.f32 %v575, 1.442695
        %v579 = vpow.pop %v578
        %580 = vadd.xlane.f32.xlu0 %v577
        %v581 = vpop.xlane.xlu0 %580
        %582 = vadd.xlane.f32.xlu0 %v579
        %v583 = vpop.xlane.xlu0 %582
        %v584 = vrcp.pop %v581
        %v585 = vrcp.pop %v583
        %v586 = vmul.f32 %v577, %v584
        %v587 = vmul.f32 %v579, %v585
        %v588 = vpack.c.bf16 %v587, %v586
        %v605 = vunpack.c.l.b16 %v445
        %v606 = vunpack.c.l.b16 %v446
        %v607 = vunpack.c.l.b16 %v447
        %v608 = vunpack.c.l.b16 %v448
        %v609 = vunpack.c.l.b16 %v449
        %v610 = vunpack.c.l.b16 %v450
        %v611 = vunpack.c.l.b16 %v451
        %v612 = vunpack.c.l.b16 %v452
        %v613 = vunpack.c.l.b16 %v453
        %v614 = vunpack.c.l.b16 %v454
        %v615 = vunpack.c.l.b16 %v455
        %v616 = vunpack.c.l.b16 %v456
        %v617 = vunpack.c.l.b16 %v457
        %v618 = vunpack.c.l.b16 %v458
        %v619 = vunpack.c.l.b16 %v459
        %v620 = vunpack.c.l.b16 %v460
        %v621 = vpack.c.b16 %v606, %v605
        %v622 = vpack.c.b16 %v608, %v607
        %v623 = vpack.c.b16 %v610, %v609
        %v624 = vpack.c.b16 %v612, %v611
        %v625 = vpack.c.b16 %v614, %v613
        %v626 = vpack.c.b16 %v616, %v615
        %v627 = vpack.c.b16 %v618, %v617
        %v628 = vpack.c.b16 %v620, %v619
        %637 = vmatprep.subr.bf16.mxu0 0
        %638 = vmatpush1.bf16.msra.mxu0 %v621
        %639 = vmatprep.subr.bf16.mxu0 0
        %640 = vmatpush1.bf16.msra.mxu0 %v622
        %641 = vmatprep.subr.bf16.mxu0 0
        %642 = vmatpush1.bf16.msra.mxu0 %v623
        %643 = vmatprep.subr.bf16.mxu0 0
        %644 = vmatpush1.bf16.msra.mxu0 %v624
        %645 = vmatprep.subr.bf16.mxu0 0
        %646 = vmatpush1.bf16.msra.mxu0 %v625
        %647 = vmatprep.subr.bf16.mxu0 0
        %648 = vmatpush1.bf16.msra.mxu0 %v626
        %649 = vmatprep.subr.bf16.mxu0 0
        %650 = vmatpush1.bf16.msra.mxu0 %v627
        %651 = vmatprep.subr.bf16.mxu0 0
        %652 = vmatpush1.bf16.msra.mxu0 %v628
        %653 = vmatprep.subr.bf16.mxu0 0
        %654 = vmatpush1.bf16.msra.mxu0 0
        %655 = vmatprep.subr.bf16.mxu0 0
        %656 = vmatpush1.bf16.msra.mxu0 0
        %657 = vmatprep.subr.bf16.mxu0 0
        %658 = vmatpush1.bf16.msra.mxu0 0
        %659 = vmatprep.subr.bf16.mxu0 0
        %660 = vmatpush1.bf16.msra.mxu0 0
        %661 = vmatprep.subr.bf16.mxu0 0
        %662 = vmatpush1.bf16.msra.mxu0 0
        %663 = vmatprep.subr.bf16.mxu0 0
        %664 = vmatpush1.bf16.msra.mxu0 0
        %665 = vmatprep.subr.bf16.mxu0 0
        %666 = vmatpush1.bf16.msra.mxu0 0
        %667 = vmatprep.subr.bf16.mxu0 0
        %668 = vmatpush1.bf16.msra.mxu0 0
        %669 = vmatprep.mubr.bf16.mxu0 0
        %670 = vmatmul.mubr.bf16.gmra.mrb[0].mxu0 %v588
        %v671 = vpop.f32.mrb[0].mxu0
        %v672 = vadd.f32 0.0, %v671
        %v673 = vpop.f32.mrb[0].mxu0
        %v674 = vpop.f32.mrb[0].mxu0
        %v675 = vadd.f32 0.0, %v674
        %v676 = vpop.f32.mrb[0].mxu0
        %677 = vdwg.mxu0
        %v678 = vpack.c.bf16 %v675, %v672
        %v679 = vld [vmem:[%s5] sm:$0xf]
        %s680 = scalar_lea.vmem %s3, 16
        %v681 = vld [vmem:[%s680] sm:$0xf]
        %v682 = vld [vmem:[%s680 + $0x4] sm:$0xf]
        %v683 = vld [vmem:[%s680 + $0x8] sm:$0xf]
        %v684 = vld [vmem:[%s680 + $0xc] sm:$0xf]
        %s685 = scalar_lea.vmem %s4, 1
        %v686 = vld [vmem:[%s685] sm:$0x1]
        %v688 = vlaneseq
        %v689 = vshrl.u32 %v688, 7
        %v690 = vsub.s32 0, %v689
        %v691 = vrot.slane %v686, %v690
        %v697 = vunpack.c.l.b16 %v681
        %v698 = vunpack.c.l.b16 %v682
        %v699 = vunpack.c.l.b16 %v683
        %v700 = vunpack.c.l.b16 %v684
        %v701 = vpack.c.b16 %v698, %v697
        %v702 = vpack.c.b16 %v700, %v699
        %705 = vmatprep.subr.bf16.mxu0 0
        %706 = vmatpush1.bf16.msra.mxu0 %v701
        %707 = vmatprep.subr.bf16.mxu0 0
        %708 = vmatpush1.bf16.msra.mxu0 %v702
        %709 = vmatprep.subr.bf16.mxu0 0
        %710 = vmatpush1.bf16.msra.mxu0 0
        %711 = vmatprep.subr.bf16.mxu0 0
        %712 = vmatpush1.bf16.msra.mxu0 0
        %713 = vmatprep.subr.bf16.mxu0 0
        %714 = vmatpush1.bf16.msra.mxu0 0
        %715 = vmatprep.subr.bf16.mxu0 0
        %716 = vmatpush1.bf16.msra.mxu0 0
        %717 = vmatprep.subr.bf16.mxu0 0
        %718 = vmatpush1.bf16.msra.mxu0 0
        %719 = vmatprep.subr.bf16.mxu0 0
        %720 = vmatpush1.bf16.msra.mxu0 0
        %721 = vmatprep.subr.bf16.mxu0 0
        %722 = vmatpush1.bf16.msra.mxu0 0
        %723 = vmatprep.subr.bf16.mxu0 0
        %724 = vmatpush1.bf16.msra.mxu0 0
        %725 = vmatprep.subr.bf16.mxu0 0
        %726 = vmatpush1.bf16.msra.mxu0 0
        %727 = vmatprep.subr.bf16.mxu0 0
        %728 = vmatpush1.bf16.msra.mxu0 0
        %729 = vmatprep.subr.bf16.mxu0 0
        %730 = vmatpush1.bf16.msra.mxu0 0
        %731 = vmatprep.subr.bf16.mxu0 0
        %732 = vmatpush1.bf16.msra.mxu0 0
        %733 = vmatprep.subr.bf16.mxu0 0
        %734 = vmatpush1.bf16.msra.mxu0 0
        %735 = vmatprep.subr.bf16.mxu0 0
        %736 = vmatpush1.bf16.msra.mxu0 0
        %737 = vmatprep.mubr.bf16.mxu0 0
        %738 = vmatmul.mubr.bf16.gmra.mrb[0].mxu0 %v385
        %v739 = vpop.f32.mrb[0].mxu0
        %v740 = vadd.f32 %v691, %v739
        %v741 = vpop.f32.mrb[0].mxu0
        %v742 = vpop.f32.mrb[0].mxu0
        %v743 = vadd.f32 %v691, %v742
        %v744 = vpop.f32.mrb[0].mxu0
        %745 = vdwg.mxu0
        %v746 = vpack.c.bf16 %v743, %v740
        %s747 = scalar_lea.vmem %s341, 64
        %v748 = vld [vmem:[%s747] sm:$0xf]
        %v749 = vld [vmem:[%s747 + $0x4] sm:$0xf]
        %v750 = vld [vmem:[%s747 + $0x8] sm:$0xf]
        %v751 = vld [vmem:[%s747 + $0xc] sm:$0xf]
        %v752 = vld [vmem:[%s747 + $0x10] sm:$0xf]
        %v753 = vld [vmem:[%s747 + $0x14] sm:$0xf]
        %v754 = vld [vmem:[%s747 + $0x18] sm:$0xf]
        %v755 = vld [vmem:[%s747 + $0x1c] sm:$0xf]
        %v756 = vld [vmem:[%s747 + $0x20] sm:$0xf]
        %v757 = vld [vmem:[%s747 + $0x24] sm:$0xf]
        %v758 = vld [vmem:[%s747 + $0x28] sm:$0xf]
        %v759 = vld [vmem:[%s747 + $0x2c] sm:$0xf]
        %v760 = vld [vmem:[%s747 + $0x30] sm:$0xf]
        %v761 = vld [vmem:[%s747 + $0x34] sm:$0xf]
        %v762 = vld [vmem:[%s747 + $0x38] sm:$0xf]
        %v763 = vld [vmem:[%s747 + $0x3c] sm:$0xf]
        %s764 = scalar_lea.vmem %s346, 64
        %v765 = vld [vmem:[%s764] sm:$0xf]
        %v766 = vld [vmem:[%s764 + $0x4] sm:$0xf]
        %v767 = vld [vmem:[%s764 + $0x8] sm:$0xf]
        %v768 = vld [vmem:[%s764 + $0xc] sm:$0xf]
        %v769 = vld [vmem:[%s764 + $0x10] sm:$0xf]
        %v770 = vld [vmem:[%s764 + $0x14] sm:$0xf]
        %v771 = vld [vmem:[%s764 + $0x18] sm:$0xf]
        %v772 = vld [vmem:[%s764 + $0x1c] sm:$0xf]
        %v773 = vld [vmem:[%s764 + $0x20] sm:$0xf]
        %v774 = vld [vmem:[%s764 + $0x24] sm:$0xf]
        %v775 = vld [vmem:[%s764 + $0x28] sm:$0xf]
        %v776 = vld [vmem:[%s764 + $0x2c] sm:$0xf]
        %v777 = vld [vmem:[%s764 + $0x30] sm:$0xf]
        %v778 = vld [vmem:[%s764 + $0x34] sm:$0xf]
        %v779 = vld [vmem:[%s764 + $0x38] sm:$0xf]
        %v780 = vld [vmem:[%s764 + $0x3c] sm:$0xf]
        %v797 = vunpack.c.l.b16 %v748
        %v798 = vunpack.c.l.b16 %v749
        %v799 = vunpack.c.l.b16 %v750
        %v800 = vunpack.c.l.b16 %v751
        %v801 = vunpack.c.l.b16 %v752
        %v802 = vunpack.c.l.b16 %v753
        %v803 = vunpack.c.l.b16 %v754
        %v804 = vunpack.c.l.b16 %v755
        %v805 = vunpack.c.l.b16 %v756
        %v806 = vunpack.c.l.b16 %v757
        %v807 = vunpack.c.l.b16 %v758
        %v808 = vunpack.c.l.b16 %v759
        %v809 = vunpack.c.l.b16 %v760
        %v810 = vunpack.c.l.b16 %v761
        %v811 = vunpack.c.l.b16 %v762
        %v812 = vunpack.c.l.b16 %v763
        %v813 = vpack.c.b16 %v798, %v797
        %v814 = vpack.c.b16 %v800, %v799
        %v815 = vpack.c.b16 %v802, %v801
        %v816 = vpack.c.b16 %v804, %v803
        %v817 = vpack.c.b16 %v806, %v805
        %v818 = vpack.c.b16 %v808, %v807
        %v819 = vpack.c.b16 %v810, %v809
        %v820 = vpack.c.b16 %v812, %v811
        %v822 = vsel %vm501, %v746, 0
        %v825 = vsel %vm501, %v813, 0
        %v828 = vsel %vm501, %v814, 0
        %v831 = vsel %vm501, %v815, 0
        %v834 = vsel %vm501, %v816, 0
        %v837 = vsel %vm501, %v817, 0
        %v840 = vsel %vm501, %v818, 0
        %v843 = vsel %vm501, %v819, 0
        %v846 = vsel %vm501, %v820, 0
        %848 = vmatprep.subr.bf16.mxu0 0
        %849 = vmatpush1.bf16.xpose.msra.mxu0 %v825
        %850 = vmatprep.subr.bf16.mxu0 0
        %851 = vmatpush1.bf16.xpose.msra.mxu0 %v828
        %852 = vmatprep.subr.bf16.mxu0 0
        %853 = vmatpush1.bf16.xpose.msra.mxu0 %v831
        %854 = vmatprep.subr.bf16.mxu0 0
        %855 = vmatpush1.bf16.xpose.msra.mxu0 %v834
        %856 = vmatprep.subr.bf16.mxu0 0
        %857 = vmatpush1.bf16.xpose.msra.mxu0 %v837
        %858 = vmatprep.subr.bf16.mxu0 0
        %859 = vmatpush1.bf16.xpose.msra.mxu0 %v840
        %860 = vmatprep.subr.bf16.mxu0 0
        %861 = vmatpush1.bf16.xpose.msra.mxu0 %v843
        %862 = vmatprep.subr.bf16.mxu0 0
        %863 = vmatpush1.bf16.xpose.msra.mxu0 %v846
        %864 = vmatprep.subr.bf16.mxu0 0
        %865 = vmatpush1.bf16.xpose.msra.mxu0 0
        %866 = vmatprep.subr.bf16.mxu0 0
        %867 = vmatpush1.bf16.xpose.msra.mxu0 0
        %868 = vmatprep.subr.bf16.mxu0 0
        %869 = vmatpush1.bf16.xpose.msra.mxu0 0
        %870 = vmatprep.subr.bf16.mxu0 0
        %871 = vmatpush1.bf16.xpose.msra.mxu0 0
        %872 = vmatprep.subr.bf16.mxu0 0
        %873 = vmatpush1.bf16.xpose.msra.mxu0 0
        %874 = vmatprep.subr.bf16.mxu0 0
        %875 = vmatpush1.bf16.xpose.msra.mxu0 0
        %876 = vmatprep.subr.bf16.mxu0 0
        %877 = vmatpush1.bf16.xpose.msra.mxu0 0
        %878 = vmatprep.subr.bf16.mxu0 0
        %879 = vmatpush1.bf16.xpose.msra.mxu0 0
        %880 = vmatprep.mubr.bf16.mxu0 0
        %881 = vmatmul.mubr.bf16.gmra.mrb[0].mxu0 %v822
        %v882 = vpop.f32.mrb[0].mxu0
        %v883 = vadd.f32 %v354, %v882
        %v884 = vpop.f32.mrb[0].mxu0
        %v885 = vpop.f32.mrb[0].mxu0
        %v886 = vadd.f32 %v354, %v885
        %v887 = vpop.f32.mrb[0].mxu0
        %888 = vdwg.mxu0
        %889 = vmax.xlane.f32.xlu0 %v883
        %v890 = vpop.xlane.xlu0 %889
        %891 = vmax.xlane.f32.xlu0 %v886
        %v892 = vpop.xlane.xlu0 %891
        %v893 = vsub.f32 %v883, %v890
        %v894 = vsub.f32 %v886, %v892
        %v895 = vmul.f32 %v893, 1.442695
        %v896 = vpow.pop %v895
        %v897 = vmul.f32 %v894, 1.442695
        %v898 = vpow.pop %v897
        %899 = vadd.xlane.f32.xlu0 %v896
        %v900 = vpop.xlane.xlu0 %899
        %901 = vadd.xlane.f32.xlu0 %v898
        %v902 = vpop.xlane.xlu0 %901
        %v903 = vrcp.pop %v900
        %v904 = vrcp.pop %v902
        %v905 = vmul.f32 %v896, %v903
        %v906 = vmul.f32 %v898, %v904
        %v907 = vpack.c.bf16 %v906, %v905
        %v924 = vunpack.c.l.b16 %v765
        %v925 = vunpack.c.l.b16 %v766
        %v926 = vunpack.c.l.b16 %v767
        %v927 = vunpack.c.l.b16 %v768
        %v928 = vunpack.c.l.b16 %v769
        %v929 = vunpack.c.l.b16 %v770
        %v930 = vunpack.c.l.b16 %v771
        %v931 = vunpack.c.l.b16 %v772
        %v932 = vunpack.c.l.b16 %v773
        %v933 = vunpack.c.l.b16 %v774
        %v934 = vunpack.c.l.b16 %v775
        %v935 = vunpack.c.l.b16 %v776
        %v936 = vunpack.c.l.b16 %v777
        %v937 = vunpack.c.l.b16 %v778
        %v938 = vunpack.c.l.b16 %v779
        %v939 = vunpack.c.l.b16 %v780
        %v940 = vpack.c.b16 %v925, %v924
        %v941 = vpack.c.b16 %v927, %v926
        %v942 = vpack.c.b16 %v929, %v928
        %v943 = vpack.c.b16 %v931, %v930
        %v944 = vpack.c.b16 %v933, %v932
        %v945 = vpack.c.b16 %v935, %v934
        %v946 = vpack.c.b16 %v937, %v936
        %v947 = vpack.c.b16 %v939, %v938
        %956 = vmatprep.subr.bf16.mxu0 0
        %957 = vmatpush1.bf16.msra.mxu0 %v940
        %958 = vmatprep.subr.bf16.mxu0 0
        %959 = vmatpush1.bf16.msra.mxu0 %v941
        %960 = vmatprep.subr.bf16.mxu0 0
        %961 = vmatpush1.bf16.msra.mxu0 %v942
        %962 = vmatprep.subr.bf16.mxu0 0
        %963 = vmatpush1.bf16.msra.mxu0 %v943
        %964 = vmatprep.subr.bf16.mxu0 0
        %965 = vmatpush1.bf16.msra.mxu0 %v944
        %966 = vmatprep.subr.bf16.mxu0 0
        %967 = vmatpush1.bf16.msra.mxu0 %v945
        %968 = vmatprep.subr.bf16.mxu0 0
        %969 = vmatpush1.bf16.msra.mxu0 %v946
        %970 = vmatprep.subr.bf16.mxu0 0
        %971 = vmatpush1.bf16.msra.mxu0 %v947
        %972 = vmatprep.subr.bf16.mxu0 0
        %973 = vmatpush1.bf16.msra.mxu0 0
        %974 = vmatprep.subr.bf16.mxu0 0
        %975 = vmatpush1.bf16.msra.mxu0 0
        %976 = vmatprep.subr.bf16.mxu0 0
        %977 = vmatpush1.bf16.msra.mxu0 0
        %978 = vmatprep.subr.bf16.mxu0 0
        %979 = vmatpush1.bf16.msra.mxu0 0
        %980 = vmatprep.subr.bf16.mxu0 0
        %981 = vmatpush1.bf16.msra.mxu0 0
        %982 = vmatprep.subr.bf16.mxu0 0
        %983 = vmatpush1.bf16.msra.mxu0 0
        %984 = vmatprep.subr.bf16.mxu0 0
        %985 = vmatpush1.bf16.msra.mxu0 0
        %986 = vmatprep.subr.bf16.mxu0 0
        %987 = vmatpush1.bf16.msra.mxu0 0
        %988 = vmatprep.mubr.bf16.mxu0 0
        %989 = vmatmul.mubr.bf16.gmra.mrb[0].mxu0 %v907
        %v990 = vpop.f32.mrb[0].mxu0
        %v991 = vadd.f32 0.0, %v990
        %v992 = vpop.f32.mrb[0].mxu0
        %v993 = vpop.f32.mrb[0].mxu0
        %v994 = vadd.f32 0.0, %v993
        %v995 = vpop.f32.mrb[0].mxu0
        %996 = vdwg.mxu0
        %v997 = vpack.c.bf16 %v994, %v991
        %s998 = scalar_lea.vmem %s5, 4
        %v999 = vld [vmem:[%s998] sm:$0xf]
        %v1001 = vsel %vm501, %v997, 0
        %vm1003 = vcmask 1043456
        %v1005 = vsel %vm1003, %v999, 0
        %1007 = vmatprep.subr.bf16.mxu0 0
        %1008 = vmatpush1.bf16.msra.mxu0 %v1005
        %1009 = vmatprep.subr.bf16.mxu0 0
        %1010 = vmatpush1.bf16.msra.mxu0 0
        %1011 = vmatprep.subr.bf16.mxu0 0
        %1012 = vmatpush1.bf16.msra.mxu0 0
        %1013 = vmatprep.subr.bf16.mxu0 0
        %1014 = vmatpush1.bf16.msra.mxu0 0
        %1015 = vmatprep.subr.bf16.mxu0 0
        %1016 = vmatpush1.bf16.msra.mxu0 0
        %1017 = vmatprep.subr.bf16.mxu0 0
        %1018 = vmatpush1.bf16.msra.mxu0 0
        %1019 = vmatprep.subr.bf16.mxu0 0
        %1020 = vmatpush1.bf16.msra.mxu0 0
        %1021 = vmatprep.subr.bf16.mxu0 0
        %1022 = vmatpush1.bf16.msra.mxu0 0
        %1023 = vmatprep.subr.bf16.mxu0 0
        %1024 = vmatpush1.bf16.msra.mxu0 0
        %1025 = vmatprep.subr.bf16.mxu0 0
        %1026 = vmatpush1.bf16.msra.mxu0 0
        %1027 = vmatprep.subr.bf16.mxu0 0
        %1028 = vmatpush1.bf16.msra.mxu0 0
        %1029 = vmatprep.subr.bf16.mxu0 0
        %1030 = vmatpush1.bf16.msra.mxu0 0
        %1031 = vmatprep.subr.bf16.mxu0 0
        %1032 = vmatpush1.bf16.msra.mxu0 0
        %1033 = vmatprep.subr.bf16.mxu0 0
        %1034 = vmatpush1.bf16.msra.mxu0 0
        %1035 = vmatprep.subr.bf16.mxu0 0
        %1036 = vmatpush1.bf16.msra.mxu0 0
        %1037 = vmatprep.subr.bf16.mxu0 0
        %1038 = vmatpush1.bf16.msra.mxu0 0
        %1039 = vmatprep.mubr.bf16.mxu0 0
        %1040 = vmatmul.mubr.bf16.gmra.mrb[0].mxu0 %v1001
        %v1041 = vpop.f32.mrb[0].mxu0
        %v1042 = vadd.f32 0.0, %v1041
        %v1043 = vpop.f32.mrb[0].mxu0
        %v1044 = vpop.f32.mrb[0].mxu0
        %v1045 = vadd.f32 0.0, %v1044
        %v1046 = vpop.f32.mrb[0].mxu0
        %1047 = vdwg.mxu0
        %v1049 = vsel %vm501, %v678, 0
        %v1052 = vsel %vm1003, %v679, 0
        %1054 = vmatprep.subr.bf16.mxu0 0
        %1055 = vmatpush1.bf16.msra.mxu0 %v1052
        %1056 = vmatprep.subr.bf16.mxu0 0
        %1057 = vmatpush1.bf16.msra.mxu0 0
        %1058 = vmatprep.subr.bf16.mxu0 0
        %1059 = vmatpush1.bf16.msra.mxu0 0
        %1060 = vmatprep.subr.bf16.mxu0 0
        %1061 = vmatpush1.bf16.msra.mxu0 0
        %1062 = vmatprep.subr.bf16.mxu0 0
        %1063 = vmatpush1.bf16.msra.mxu0 0
        %1064 = vmatprep.subr.bf16.mxu0 0
        %1065 = vmatpush1.bf16.msra.mxu0 0
        %1066 = vmatprep.subr.bf16.mxu0 0
        %1067 = vmatpush1.bf16.msra.mxu0 0
        %1068 = vmatprep.subr.bf16.mxu0 0
        %1069 = vmatpush1.bf16.msra.mxu0 0
        %1070 = vmatprep.subr.bf16.mxu0 0
        %1071 = vmatpush1.bf16.msra.mxu0 0
        %1072 = vmatprep.subr.bf16.mxu0 0
        %1073 = vmatpush1.bf16.msra.mxu0 0
        %1074 = vmatprep.subr.bf16.mxu0 0
        %1075 = vmatpush1.bf16.msra.mxu0 0
        %1076 = vmatprep.subr.bf16.mxu0 0
        %1077 = vmatpush1.bf16.msra.mxu0 0
        %1078 = vmatprep.subr.bf16.mxu0 0
        %1079 = vmatpush1.bf16.msra.mxu0 0
        %1080 = vmatprep.subr.bf16.mxu0 0
        %1081 = vmatpush1.bf16.msra.mxu0 0
        %1082 = vmatprep.subr.bf16.mxu0 0
        %1083 = vmatpush1.bf16.msra.mxu0 0
        %1084 = vmatprep.subr.bf16.mxu0 0
        %1085 = vmatpush1.bf16.msra.mxu0 0
        %1086 = vmatprep.mubr.bf16.mxu0 0
        %1087 = vmatmul.mubr.bf16.gmra.mrb[0].mxu0 %v1049
        %v1088 = vpop.f32.mrb[0].mxu0
        %v1089 = vadd.f32 %v1042, %v1088
        %v1090 = vpop.f32.mrb[0].mxu0
        %v1091 = vpop.f32.mrb[0].mxu0
        %v1092 = vadd.f32 %v1045, %v1091
        %v1093 = vpop.f32.mrb[0].mxu0
        %1094 = vdwg.mxu0
        %s1095 = scalar_lea.vmem %s3, 32
        %v1096 = vld [vmem:[%s1095] sm:$0xf]
        %v1097 = vld [vmem:[%s1095 + $0x4] sm:$0xf]
        %v1098 = vld [vmem:[%s1095 + $0x8] sm:$0xf]
        %v1099 = vld [vmem:[%s1095 + $0xc] sm:$0xf]
        %s1100 = scalar_lea.vmem %s4, 2
        %v1101 = vld [vmem:[%s1100] sm:$0x1]
        %v1103 = vlaneseq
        %v1104 = vshrl.u32 %v1103, 7
        %v1105 = vsub.s32 0, %v1104
        %v1106 = vrot.slane %v1101, %v1105
        %v1112 = vunpack.c.l.b16 %v1096
        %v1113 = vunpack.c.l.b16 %v1097
        %v1114 = vunpack.c.l.b16 %v1098
        %v1115 = vunpack.c.l.b16 %v1099
        %v1116 = vpack.c.b16 %v1113, %v1112
        %v1117 = vpack.c.b16 %v1115, %v1114
        %1120 = vmatprep.subr.bf16.mxu0 0
        %1121 = vmatpush1.bf16.msra.mxu0 %v1116
        %1122 = vmatprep.subr.bf16.mxu0 0
        %1123 = vmatpush1.bf16.msra.mxu0 %v1117
        %1124 = vmatprep.subr.bf16.mxu0 0
        %1125 = vmatpush1.bf16.msra.mxu0 0
        %1126 = vmatprep.subr.bf16.mxu0 0
        %1127 = vmatpush1.bf16.msra.mxu0 0
        %1128 = vmatprep.subr.bf16.mxu0 0
        %1129 = vmatpush1.bf16.msra.mxu0 0
        %1130 = vmatprep.subr.bf16.mxu0 0
        %1131 = vmatpush1.bf16.msra.mxu0 0
        %1132 = vmatprep.subr.bf16.mxu0 0
        %1133 = vmatpush1.bf16.msra.mxu0 0
        %1134 = vmatprep.subr.bf16.mxu0 0
        %1135 = vmatpush1.bf16.msra.mxu0 0
        %1136 = vmatprep.subr.bf16.mxu0 0
        %1137 = vmatpush1.bf16.msra.mxu0 0
        %1138 = vmatprep.subr.bf16.mxu0 0
        %1139 = vmatpush1.bf16.msra.mxu0 0
        %1140 = vmatprep.subr.bf16.mxu0 0
        %1141 = vmatpush1.bf16.msra.mxu0 0
        %1142 = vmatprep.subr.bf16.mxu0 0
        %1143 = vmatpush1.bf16.msra.mxu0 0
        %1144 = vmatprep.subr.bf16.mxu0 0
        %1145 = vmatpush1.bf16.msra.mxu0 0
        %1146 = vmatprep.subr.bf16.mxu0 0
        %1147 = vmatpush1.bf16.msra.mxu0 0
        %1148 = vmatprep.subr.bf16.mxu0 0
        %1149 = vmatpush1.bf16.msra.mxu0 0
        %1150 = vmatprep.subr.bf16.mxu0 0
        %1151 = vmatpush1.bf16.msra.mxu0 0
        %1152 = vmatprep.mubr.bf16.mxu0 0
        %1153 = vmatmul.mubr.bf16.gmra.mrb[0].mxu0 %v385
        %v1154 = vpop.f32.mrb[0].mxu0
        %v1155 = vadd.f32 %v1106, %v1154
        %v1156 = vpop.f32.mrb[0].mxu0
        %v1157 = vpop.f32.mrb[0].mxu0
        %v1158 = vadd.f32 %v1106, %v1157
        %v1159 = vpop.f32.mrb[0].mxu0
        %1160 = vdwg.mxu0
        %v1161 = vpack.c.bf16 %v1158, %v1155
        %s1162 = scalar_lea.vmem %s341, 128
        %v1163 = vld [vmem:[%s1162] sm:$0xf]
        %v1164 = vld [vmem:[%s1162 + $0x4] sm:$0xf]
        %v1165 = vld [vmem:[%s1162 + $0x8] sm:$0xf]
        %v1166 = vld [vmem:[%s1162 + $0xc] sm:$0xf]
        %v1167 = vld [vmem:[%s1162 + $0x10] sm:$0xf]
        %v1168 = vld [vmem:[%s1162 + $0x14] sm:$0xf]
        %v1169 = vld [vmem:[%s1162 + $0x18] sm:$0xf]
        %v1170 = vld [vmem:[%s1162 + $0x1c] sm:$0xf]
        %v1171 = vld [vmem:[%s1162 + $0x20] sm:$0xf]
        %v1172 = vld [vmem:[%s1162 + $0x24] sm:$0xf]
        %v1173 = vld [vmem:[%s1162 + $0x28] sm:$0xf]
        %v1174 = vld [vmem:[%s1162 + $0x2c] sm:$0xf]
        %v1175 = vld [vmem:[%s1162 + $0x30] sm:$0xf]
        %v1176 = vld [vmem:[%s1162 + $0x34] sm:$0xf]
        %v1177 = vld [vmem:[%s1162 + $0x38] sm:$0xf]
        %v1178 = vld [vmem:[%s1162 + $0x3c] sm:$0xf]
        %s1179 = scalar_lea.vmem %s346, 128
        %v1180 = vld [vmem:[%s1179] sm:$0xf]
        %v1181 = vld [vmem:[%s1179 + $0x4] sm:$0xf]
        %v1182 = vld [vmem:[%s1179 + $0x8] sm:$0xf]
        %v1183 = vld [vmem:[%s1179 + $0xc] sm:$0xf]
        %v1184 = vld [vmem:[%s1179 + $0x10] sm:$0xf]
        %v1185 = vld [vmem:[%s1179 + $0x14] sm:$0xf]
        %v1186 = vld [vmem:[%s1179 + $0x18] sm:$0xf]
        %v1187 = vld [vmem:[%s1179 + $0x1c] sm:$0xf]
        %v1188 = vld [vmem:[%s1179 + $0x20] sm:$0xf]
        %v1189 = vld [vmem:[%s1179 + $0x24] sm:$0xf]
        %v1190 = vld [vmem:[%s1179 + $0x28] sm:$0xf]
        %v1191 = vld [vmem:[%s1179 + $0x2c] sm:$0xf]
        %v1192 = vld [vmem:[%s1179 + $0x30] sm:$0xf]
        %v1193 = vld [vmem:[%s1179 + $0x34] sm:$0xf]
        %v1194 = vld [vmem:[%s1179 + $0x38] sm:$0xf]
        %v1195 = vld [vmem:[%s1179 + $0x3c] sm:$0xf]
        %v1212 = vunpack.c.l.b16 %v1163
        %v1213 = vunpack.c.l.b16 %v1164
        %v1214 = vunpack.c.l.b16 %v1165
        %v1215 = vunpack.c.l.b16 %v1166
        %v1216 = vunpack.c.l.b16 %v1167
        %v1217 = vunpack.c.l.b16 %v1168
        %v1218 = vunpack.c.l.b16 %v1169
        %v1219 = vunpack.c.l.b16 %v1170
        %v1220 = vunpack.c.l.b16 %v1171
        %v1221 = vunpack.c.l.b16 %v1172
        %v1222 = vunpack.c.l.b16 %v1173
        %v1223 = vunpack.c.l.b16 %v1174
        %v1224 = vunpack.c.l.b16 %v1175
        %v1225 = vunpack.c.l.b16 %v1176
        %v1226 = vunpack.c.l.b16 %v1177
        %v1227 = vunpack.c.l.b16 %v1178
        %v1228 = vpack.c.b16 %v1213, %v1212
        %v1229 = vpack.c.b16 %v1215, %v1214
        %v1230 = vpack.c.b16 %v1217, %v1216
        %v1231 = vpack.c.b16 %v1219, %v1218
        %v1232 = vpack.c.b16 %v1221, %v1220
        %v1233 = vpack.c.b16 %v1223, %v1222
        %v1234 = vpack.c.b16 %v1225, %v1224
        %v1235 = vpack.c.b16 %v1227, %v1226
        %v1237 = vsel %vm501, %v1161, 0
        %v1240 = vsel %vm501, %v1228, 0
        %v1243 = vsel %vm501, %v1229, 0
        %v1246 = vsel %vm501, %v1230, 0
        %v1249 = vsel %vm501, %v1231, 0
        %v1252 = vsel %vm501, %v1232, 0
        %v1255 = vsel %vm501, %v1233, 0
        %v1258 = vsel %vm501, %v1234, 0
        %v1261 = vsel %vm501, %v1235, 0
        %1263 = vmatprep.subr.bf16.mxu0 0
        %1264 = vmatpush1.bf16.xpose.msra.mxu0 %v1240
        %1265 = vmatprep.subr.bf16.mxu0 0
        %1266 = vmatpush1.bf16.xpose.msra.mxu0 %v1243
        %1267 = vmatprep.subr.bf16.mxu0 0
        %1268 = vmatpush1.bf16.xpose.msra.mxu0 %v1246
        %1269 = vmatprep.subr.bf16.mxu0 0
        %1270 = vmatpush1.bf16.xpose.msra.mxu0 %v1249
        %1271 = vmatprep.subr.bf16.mxu0 0
        %1272 = vmatpush1.bf16.xpose.msra.mxu0 %v1252
        %1273 = vmatprep.subr.bf16.mxu0 0
        %1274 = vmatpush1.bf16.xpose.msra.mxu0 %v1255
        %1275 = vmatprep.subr.bf16.mxu0 0
        %1276 = vmatpush1.bf16.xpose.msra.mxu0 %v1258
        %1277 = vmatprep.subr.bf16.mxu0 0
        %1278 = vmatpush1.bf16.xpose.msra.mxu0 %v1261
        %1279 = vmatprep.subr.bf16.mxu0 0
        %1280 = vmatpush1.bf16.xpose.msra.mxu0 0
        %1281 = vmatprep.subr.bf16.mxu0 0
        %1282 = vmatpush1.bf16.xpose.msra.mxu0 0
        %1283 = vmatprep.subr.bf16.mxu0 0
        %1284 = vmatpush1.bf16.xpose.msra.mxu0 0
        %1285 = vmatprep.subr.bf16.mxu0 0
        %1286 = vmatpush1.bf16.xpose.msra.mxu0 0
        %1287 = vmatprep.subr.bf16.mxu0 0
        %1288 = vmatpush1.bf16.xpose.msra.mxu0 0
        %1289 = vmatprep.subr.bf16.mxu0 0
        %1290 = vmatpush1.bf16.xpose.msra.mxu0 0
        %1291 = vmatprep.subr.bf16.mxu0 0
        %1292 = vmatpush1.bf16.xpose.msra.mxu0 0
        %1293 = vmatprep.subr.bf16.mxu0 0
        %1294 = vmatpush1.bf16.xpose.msra.mxu0 0
        %1295 = vmatprep.mubr.bf16.mxu0 0
        %1296 = vmatmul.mubr.bf16.gmra.mrb[0].mxu0 %v1237
        %v1297 = vpop.f32.mrb[0].mxu0
        %v1298 = vadd.f32 %v354, %v1297
        %v1299 = vpop.f32.mrb[0].mxu0
        %v1300 = vpop.f32.mrb[0].mxu0
        %v1301 = vadd.f32 %v354, %v1300
        %v1302 = vpop.f32.mrb[0].mxu0
        %1303 = vdwg.mxu0
        %1304 = vmax.xlane.f32.xlu0 %v1298
        %v1305 = vpop.xlane.xlu0 %1304
        %1306 = vmax.xlane.f32.xlu0 %v1301
        %v1307 = vpop.xlane.xlu0 %1306
        %v1308 = vsub.f32 %v1298, %v1305
        %v1309 = vsub.f32 %v1301, %v1307
        %v1310 = vmul.f32 %v1308, 1.442695
        %v1311 = vpow.pop %v1310
        %v1312 = vmul.f32 %v1309, 1.442695
        %v1313 = vpow.pop %v1312
        %1314 = vadd.xlane.f32.xlu0 %v1311
        %v1315 = vpop.xlane.xlu0 %1314
        %1316 = vadd.xlane.f32.xlu0 %v1313
        %v1317 = vpop.xlane.xlu0 %1316
        %v1318 = vrcp.pop %v1315
        %v1319 = vrcp.pop %v1317
        %v1320 = vmul.f32 %v1311, %v1318
        %v1321 = vmul.f32 %v1313, %v1319
        %v1322 = vpack.c.bf16 %v1321, %v1320
        %v1339 = vunpack.c.l.b16 %v1180
        %v1340 = vunpack.c.l.b16 %v1181
        %v1341 = vunpack.c.l.b16 %v1182
        %v1342 = vunpack.c.l.b16 %v1183
        %v1343 = vunpack.c.l.b16 %v1184
        %v1344 = vunpack.c.l.b16 %v1185
        %v1345 = vunpack.c.l.b16 %v1186
        %v1346 = vunpack.c.l.b16 %v1187
        %v1347 = vunpack.c.l.b16 %v1188
        %v1348 = vunpack.c.l.b16 %v1189
        %v1349 = vunpack.c.l.b16 %v1190
        %v1350 = vunpack.c.l.b16 %v1191
        %v1351 = vunpack.c.l.b16 %v1192
        %v1352 = vunpack.c.l.b16 %v1193
        %v1353 = vunpack.c.l.b16 %v1194
        %v1354 = vunpack.c.l.b16 %v1195
        %v1355 = vpack.c.b16 %v1340, %v1339
        %v1356 = vpack.c.b16 %v1342, %v1341
        %v1357 = vpack.c.b16 %v1344, %v1343
        %v1358 = vpack.c.b16 %v1346, %v1345
        %v1359 = vpack.c.b16 %v1348, %v1347
        %v1360 = vpack.c.b16 %v1350, %v1349
        %v1361 = vpack.c.b16 %v1352, %v1351
        %v1362 = vpack.c.b16 %v1354, %v1353
        %1371 = vmatprep.subr.bf16.mxu0 0
        %1372 = vmatpush1.bf16.msra.mxu0 %v1355
        %1373 = vmatprep.subr.bf16.mxu0 0
        %1374 = vmatpush1.bf16.msra.mxu0 %v1356
        %1375 = vmatprep.subr.bf16.mxu0 0
        %1376 = vmatpush1.bf16.msra.mxu0 %v1357
        %1377 = vmatprep.subr.bf16.mxu0 0
        %1378 = vmatpush1.bf16.msra.mxu0 %v1358
        %1379 = vmatprep.subr.bf16.mxu0 0
        %1380 = vmatpush1.bf16.msra.mxu0 %v1359
        %1381 = vmatprep.subr.bf16.mxu0 0
        %1382 = vmatpush1.bf16.msra.mxu0 %v1360
        %1383 = vmatprep.subr.bf16.mxu0 0
        %1384 = vmatpush1.bf16.msra.mxu0 %v1361
        %1385 = vmatprep.subr.bf16.mxu0 0
        %1386 = vmatpush1.bf16.msra.mxu0 %v1362
        %1387 = vmatprep.subr.bf16.mxu0 0
        %1388 = vmatpush1.bf16.msra.mxu0 0
        %1389 = vmatprep.subr.bf16.mxu0 0
        %1390 = vmatpush1.bf16.msra.mxu0 0
        %1391 = vmatprep.subr.bf16.mxu0 0
        %1392 = vmatpush1.bf16.msra.mxu0 0
        %1393 = vmatprep.subr.bf16.mxu0 0
        %1394 = vmatpush1.bf16.msra.mxu0 0
        %1395 = vmatprep.subr.bf16.mxu0 0
        %1396 = vmatpush1.bf16.msra.mxu0 0
        %1397 = vmatprep.subr.bf16.mxu0 0
        %1398 = vmatpush1.bf16.msra.mxu0 0
        %1399 = vmatprep.subr.bf16.mxu0 0
        %1400 = vmatpush1.bf16.msra.mxu0 0
        %1401 = vmatprep.subr.bf16.mxu0 0
        %1402 = vmatpush1.bf16.msra.mxu0 0
        %1403 = vmatprep.mubr.bf16.mxu0 0
        %1404 = vmatmul.mubr.bf16.gmra.mrb[0].mxu0 %v1322
        %v1405 = vpop.f32.mrb[0].mxu0
        %v1406 = vadd.f32 0.0, %v1405
        %v1407 = vpop.f32.mrb[0].mxu0
        %v1408 = vpop.f32.mrb[0].mxu0
        %v1409 = vadd.f32 0.0, %v1408
        %v1410 = vpop.f32.mrb[0].mxu0
        %1411 = vdwg.mxu0
        %v1412 = vpack.c.bf16 %v1409, %v1406
        %s1413 = scalar_lea.vmem %s5, 8
        %v1414 = vld [vmem:[%s1413] sm:$0xf]
        %v1416 = vsel %vm501, %v1412, 0
        %v1419 = vsel %vm1003, %v1414, 0
        %1421 = vmatprep.subr.bf16.mxu0 0
        %1422 = vmatpush1.bf16.msra.mxu0 %v1419
        %1423 = vmatprep.subr.bf16.mxu0 0
        %1424 = vmatpush1.bf16.msra.mxu0 0
        %1425 = vmatprep.subr.bf16.mxu0 0
        %1426 = vmatpush1.bf16.msra.mxu0 0
        %1427 = vmatprep.subr.bf16.mxu0 0
        %1428 = vmatpush1.bf16.msra.mxu0 0
        %1429 = vmatprep.subr.bf16.mxu0 0
        %1430 = vmatpush1.bf16.msra.mxu0 0
        %1431 = vmatprep.subr.bf16.mxu0 0
        %1432 = vmatpush1.bf16.msra.mxu0 0
        %1433 = vmatprep.subr.bf16.mxu0 0
        %1434 = vmatpush1.bf16.msra.mxu0 0
        %1435 = vmatprep.subr.bf16.mxu0 0
        %1436 = vmatpush1.bf16.msra.mxu0 0
        %1437 = vmatprep.subr.bf16.mxu0 0
        %1438 = vmatpush1.bf16.msra.mxu0 0
        %1439 = vmatprep.subr.bf16.mxu0 0
        %1440 = vmatpush1.bf16.msra.mxu0 0
        %1441 = vmatprep.subr.bf16.mxu0 0
        %1442 = vmatpush1.bf16.msra.mxu0 0
        %1443 = vmatprep.subr.bf16.mxu0 0
        %1444 = vmatpush1.bf16.msra.mxu0 0
        %1445 = vmatprep.subr.bf16.mxu0 0
        %1446 = vmatpush1.bf16.msra.mxu0 0
        %1447 = vmatprep.subr.bf16.mxu0 0
        %1448 = vmatpush1.bf16.msra.mxu0 0
        %1449 = vmatprep.subr.bf16.mxu0 0
        %1450 = vmatpush1.bf16.msra.mxu0 0
        %1451 = vmatprep.subr.bf16.mxu0 0
        %1452 = vmatpush1.bf16.msra.mxu0 0
        %1453 = vmatprep.mubr.bf16.mxu0 0
        %1454 = vmatmul.mubr.bf16.gmra.mrb[0].mxu0 %v1416
        %v1455 = vpop.f32.mrb[0].mxu0
        %v1456 = vadd.f32 0.0, %v1455
        %v1457 = vpop.f32.mrb[0].mxu0
        %v1458 = vpop.f32.mrb[0].mxu0
        %v1459 = vadd.f32 0.0, %v1458
        %v1460 = vpop.f32.mrb[0].mxu0
        %1461 = vdwg.mxu0
        %v1462 = vadd.f32 %v1089, %v1456
        %v1463 = vadd.f32 %v1092, %v1459
        %s1464 = scalar_lea.vmem %s3, 48
        %v1465 = vld [vmem:[%s1464] sm:$0xf]
        %v1466 = vld [vmem:[%s1464 + $0x4] sm:$0xf]
        %v1467 = vld [vmem:[%s1464 + $0x8] sm:$0xf]
        %v1468 = vld [vmem:[%s1464 + $0xc] sm:$0xf]
        %s1469 = scalar_lea.vmem %s4, 3
        %v1470 = vld [vmem:[%s1469] sm:$0x1]
        %v1472 = vlaneseq
        %v1473 = vshrl.u32 %v1472, 7
        %v1474 = vsub.s32 0, %v1473
        %v1475 = vrot.slane %v1470, %v1474
        %v1481 = vunpack.c.l.b16 %v1465
        %v1482 = vunpack.c.l.b16 %v1466
        %v1483 = vunpack.c.l.b16 %v1467
        %v1484 = vunpack.c.l.b16 %v1468
        %v1485 = vpack.c.b16 %v1482, %v1481
        %v1486 = vpack.c.b16 %v1484, %v1483
        %1489 = vmatprep.subr.bf16.mxu0 0
        %1490 = vmatpush1.bf16.msra.mxu0 %v1485
        %1491 = vmatprep.subr.bf16.mxu0 0
        %1492 = vmatpush1.bf16.msra.mxu0 %v1486
        %1493 = vmatprep.subr.bf16.mxu0 0
        %1494 = vmatpush1.bf16.msra.mxu0 0
        %1495 = vmatprep.subr.bf16.mxu0 0
        %1496 = vmatpush1.bf16.msra.mxu0 0
        %1497 = vmatprep.subr.bf16.mxu0 0
        %1498 = vmatpush1.bf16.msra.mxu0 0
        %1499 = vmatprep.subr.bf16.mxu0 0
        %1500 = vmatpush1.bf16.msra.mxu0 0
        %1501 = vmatprep.subr.bf16.mxu0 0
        %1502 = vmatpush1.bf16.msra.mxu0 0
        %1503 = vmatprep.subr.bf16.mxu0 0
        %1504 = vmatpush1.bf16.msra.mxu0 0
        %1505 = vmatprep.subr.bf16.mxu0 0
        %1506 = vmatpush1.bf16.msra.mxu0 0
        %1507 = vmatprep.subr.bf16.mxu0 0
        %1508 = vmatpush1.bf16.msra.mxu0 0
        %1509 = vmatprep.subr.bf16.mxu0 0
        %1510 = vmatpush1.bf16.msra.mxu0 0
        %1511 = vmatprep.subr.bf16.mxu0 0
        %1512 = vmatpush1.bf16.msra.mxu0 0
        %1513 = vmatprep.subr.bf16.mxu0 0
        %1514 = vmatpush1.bf16.msra.mxu0 0
        %1515 = vmatprep.subr.bf16.mxu0 0
        %1516 = vmatpush1.bf16.msra.mxu0 0
        %1517 = vmatprep.subr.bf16.mxu0 0
        %1518 = vmatpush1.bf16.msra.mxu0 0
        %1519 = vmatprep.subr.bf16.mxu0 0
        %1520 = vmatpush1.bf16.msra.mxu0 0
        %1521 = vmatprep.mubr.bf16.mxu0 0
        %1522 = vmatmul.mubr.bf16.gmra.mrb[0].mxu0 %v385
        %v1523 = vpop.f32.mrb[0].mxu0
        %v1524 = vadd.f32 %v1475, %v1523
        %v1525 = vpop.f32.mrb[0].mxu0
        %v1526 = vpop.f32.mrb[0].mxu0
        %v1527 = vadd.f32 %v1475, %v1526
        %v1528 = vpop.f32.mrb[0].mxu0
        %1529 = vdwg.mxu0
        %v1530 = vpack.c.bf16 %v1527, %v1524
        %s1531 = scalar_lea.vmem %s341, 192
        %v1532 = vld [vmem:[%s1531] sm:$0xf]
        %v1533 = vld [vmem:[%s1531 + $0x4] sm:$0xf]
        %v1534 = vld [vmem:[%s1531 + $0x8] sm:$0xf]
        %v1535 = vld [vmem:[%s1531 + $0xc] sm:$0xf]
        %v1536 = vld [vmem:[%s1531 + $0x10] sm:$0xf]
        %v1537 = vld [vmem:[%s1531 + $0x14] sm:$0xf]
        %v1538 = vld [vmem:[%s1531 + $0x18] sm:$0xf]
        %v1539 = vld [vmem:[%s1531 + $0x1c] sm:$0xf]
        %v1540 = vld [vmem:[%s1531 + $0x20] sm:$0xf]
        %v1541 = vld [vmem:[%s1531 + $0x24] sm:$0xf]
        %v1542 = vld [vmem:[%s1531 + $0x28] sm:$0xf]
        %v1543 = vld [vmem:[%s1531 + $0x2c] sm:$0xf]
        %v1544 = vld [vmem:[%s1531 + $0x30] sm:$0xf]
        %v1545 = vld [vmem:[%s1531 + $0x34] sm:$0xf]
        %v1546 = vld [vmem:[%s1531 + $0x38] sm:$0xf]
        %v1547 = vld [vmem:[%s1531 + $0x3c] sm:$0xf]
        %s1548 = scalar_lea.vmem %s346, 192
        %v1549 = vld [vmem:[%s1548] sm:$0xf]
        %v1550 = vld [vmem:[%s1548 + $0x4] sm:$0xf]
        %v1551 = vld [vmem:[%s1548 + $0x8] sm:$0xf]
        %v1552 = vld [vmem:[%s1548 + $0xc] sm:$0xf]
        %v1553 = vld [vmem:[%s1548 + $0x10] sm:$0xf]
        %v1554 = vld [vmem:[%s1548 + $0x14] sm:$0xf]
        %v1555 = vld [vmem:[%s1548 + $0x18] sm:$0xf]
        %v1556 = vld [vmem:[%s1548 + $0x1c] sm:$0xf]
        %v1557 = vld [vmem:[%s1548 + $0x20] sm:$0xf]
        %v1558 = vld [vmem:[%s1548 + $0x24] sm:$0xf]
        %v1559 = vld [vmem:[%s1548 + $0x28] sm:$0xf]
        %v1560 = vld [vmem:[%s1548 + $0x2c] sm:$0xf]
        %v1561 = vld [vmem:[%s1548 + $0x30] sm:$0xf]
        %v1562 = vld [vmem:[%s1548 + $0x34] sm:$0xf]
        %v1563 = vld [vmem:[%s1548 + $0x38] sm:$0xf]
        %v1564 = vld [vmem:[%s1548 + $0x3c] sm:$0xf]
        %v1581 = vunpack.c.l.b16 %v1532
        %v1582 = vunpack.c.l.b16 %v1533
        %v1583 = vunpack.c.l.b16 %v1534
        %v1584 = vunpack.c.l.b16 %v1535
        %v1585 = vunpack.c.l.b16 %v1536
        %v1586 = vunpack.c.l.b16 %v1537
        %v1587 = vunpack.c.l.b16 %v1538
        %v1588 = vunpack.c.l.b16 %v1539
        %v1589 = vunpack.c.l.b16 %v1540
        %v1590 = vunpack.c.l.b16 %v1541
        %v1591 = vunpack.c.l.b16 %v1542
        %v1592 = vunpack.c.l.b16 %v1543
        %v1593 = vunpack.c.l.b16 %v1544
        %v1594 = vunpack.c.l.b16 %v1545
        %v1595 = vunpack.c.l.b16 %v1546
        %v1596 = vunpack.c.l.b16 %v1547
        %v1597 = vpack.c.b16 %v1582, %v1581
        %v1598 = vpack.c.b16 %v1584, %v1583
        %v1599 = vpack.c.b16 %v1586, %v1585
        %v1600 = vpack.c.b16 %v1588, %v1587
        %v1601 = vpack.c.b16 %v1590, %v1589
        %v1602 = vpack.c.b16 %v1592, %v1591
        %v1603 = vpack.c.b16 %v1594, %v1593
        %v1604 = vpack.c.b16 %v1596, %v1595
        %v1606 = vsel %vm501, %v1530, 0
        %v1609 = vsel %vm501, %v1597, 0
        %v1612 = vsel %vm501, %v1598, 0
        %v1615 = vsel %vm501, %v1599, 0
        %v1618 = vsel %vm501, %v1600, 0
        %v1621 = vsel %vm501, %v1601, 0
        %v1624 = vsel %vm501, %v1602, 0
        %v1627 = vsel %vm501, %v1603, 0
        %v1630 = vsel %vm501, %v1604, 0
        %1632 = vmatprep.subr.bf16.mxu0 0
        %1633 = vmatpush1.bf16.xpose.msra.mxu0 %v1609
        %1634 = vmatprep.subr.bf16.mxu0 0
        %1635 = vmatpush1.bf16.xpose.msra.mxu0 %v1612
        %1636 = vmatprep.subr.bf16.mxu0 0
        %1637 = vmatpush1.bf16.xpose.msra.mxu0 %v1615
        %1638 = vmatprep.subr.bf16.mxu0 0
        %1639 = vmatpush1.bf16.xpose.msra.mxu0 %v1618
        %1640 = vmatprep.subr.bf16.mxu0 0
        %1641 = vmatpush1.bf16.xpose.msra.mxu0 %v1621
        %1642 = vmatprep.subr.bf16.mxu0 0
        %1643 = vmatpush1.bf16.xpose.msra.mxu0 %v1624
        %1644 = vmatprep.subr.bf16.mxu0 0
        %1645 = vmatpush1.bf16.xpose.msra.mxu0 %v1627
        %1646 = vmatprep.subr.bf16.mxu0 0
        %1647 = vmatpush1.bf16.xpose.msra.mxu0 %v1630
        %1648 = vmatprep.subr.bf16.mxu0 0
        %1649 = vmatpush1.bf16.xpose.msra.mxu0 0
        %1650 = vmatprep.subr.bf16.mxu0 0
        %1651 = vmatpush1.bf16.xpose.msra.mxu0 0
        %1652 = vmatprep.subr.bf16.mxu0 0
        %1653 = vmatpush1.bf16.xpose.msra.mxu0 0
        %1654 = vmatprep.subr.bf16.mxu0 0
        %1655 = vmatpush1.bf16.xpose.msra.mxu0 0
        %1656 = vmatprep.subr.bf16.mxu0 0
        %1657 = vmatpush1.bf16.xpose.msra.mxu0 0
        %1658 = vmatprep.subr.bf16.mxu0 0
        %1659 = vmatpush1.bf16.xpose.msra.mxu0 0
        %1660 = vmatprep.subr.bf16.mxu0 0
        %1661 = vmatpush1.bf16.xpose.msra.mxu0 0
        %1662 = vmatprep.subr.bf16.mxu0 0
        %1663 = vmatpush1.bf16.xpose.msra.mxu0 0
        %1664 = vmatprep.mubr.bf16.mxu0 0
        %1665 = vmatmul.mubr.bf16.gmra.mrb[0].mxu0 %v1606
        %v1666 = vpop.f32.mrb[0].mxu0
        %v1667 = vadd.f32 %v354, %v1666
        %v1668 = vpop.f32.mrb[0].mxu0
        %v1669 = vpop.f32.mrb[0].mxu0
        %v1670 = vadd.f32 %v354, %v1669
        %v1671 = vpop.f32.mrb[0].mxu0
        %1672 = vdwg.mxu0
        %1673 = vmax.xlane.f32.xlu0 %v1667
        %v1674 = vpop.xlane.xlu0 %1673
        %1675 = vmax.xlane.f32.xlu0 %v1670
        %v1676 = vpop.xlane.xlu0 %1675
        %v1677 = vsub.f32 %v1667, %v1674
        %v1678 = vsub.f32 %v1670, %v1676
        %v1679 = vmul.f32 %v1677, 1.442695
        %v1680 = vpow.pop %v1679
        %v1681 = vmul.f32 %v1678, 1.442695
        %v1682 = vpow.pop %v1681
        %1683 = vadd.xlane.f32.xlu0 %v1680
        %v1684 = vpop.xlane.xlu0 %1683
        %1685 = vadd.xlane.f32.xlu0 %v1682
        %v1686 = vpop.xlane.xlu0 %1685
        %v1687 = vrcp.pop %v1684
        %v1688 = vrcp.pop %v1686
        %v1689 = vmul.f32 %v1680, %v1687
        %v1690 = vmul.f32 %v1682, %v1688
        %v1691 = vpack.c.bf16 %v1690, %v1689
        %v1708 = vunpack.c.l.b16 %v1549
        %v1709 = vunpack.c.l.b16 %v1550
        %v1710 = vunpack.c.l.b16 %v1551
        %v1711 = vunpack.c.l.b16 %v1552
        %v1712 = vunpack.c.l.b16 %v1553
        %v1713 = vunpack.c.l.b16 %v1554
        %v1714 = vunpack.c.l.b16 %v1555
        %v1715 = vunpack.c.l.b16 %v1556
        %v1716 = vunpack.c.l.b16 %v1557
        %v1717 = vunpack.c.l.b16 %v1558
        %v1718 = vunpack.c.l.b16 %v1559
        %v1719 = vunpack.c.l.b16 %v1560
        %v1720 = vunpack.c.l.b16 %v1561
        %v1721 = vunpack.c.l.b16 %v1562
        %v1722 = vunpack.c.l.b16 %v1563
        %v1723 = vunpack.c.l.b16 %v1564
        %v1724 = vpack.c.b16 %v1709, %v1708
        %v1725 = vpack.c.b16 %v1711, %v1710
        %v1726 = vpack.c.b16 %v1713, %v1712
        %v1727 = vpack.c.b16 %v1715, %v1714
        %v1728 = vpack.c.b16 %v1717, %v1716
        %v1729 = vpack.c.b16 %v1719, %v1718
        %v1730 = vpack.c.b16 %v1721, %v1720
        %v1731 = vpack.c.b16 %v1723, %v1722
        %1740 = vmatprep.subr.bf16.mxu0 0
        %1741 = vmatpush1.bf16.msra.mxu0 %v1724
        %1742 = vmatprep.subr.bf16.mxu0 0
        %1743 = vmatpush1.bf16.msra.mxu0 %v1725
        %1744 = vmatprep.subr.bf16.mxu0 0
        %1745 = vmatpush1.bf16.msra.mxu0 %v1726
        %1746 = vmatprep.subr.bf16.mxu0 0
        %1747 = vmatpush1.bf16.msra.mxu0 %v1727
        %1748 = vmatprep.subr.bf16.mxu0 0
        %1749 = vmatpush1.bf16.msra.mxu0 %v1728
        %1750 = vmatprep.subr.bf16.mxu0 0
        %1751 = vmatpush1.bf16.msra.mxu0 %v1729
        %1752 = vmatprep.subr.bf16.mxu0 0
        %1753 = vmatpush1.bf16.msra.mxu0 %v1730
        %1754 = vmatprep.subr.bf16.mxu0 0
        %1755 = vmatpush1.bf16.msra.mxu0 %v1731
        %1756 = vmatprep.subr.bf16.mxu0 0
        %1757 = vmatpush1.bf16.msra.mxu0 0
        %1758 = vmatprep.subr.bf16.mxu0 0
        %1759 = vmatpush1.bf16.msra.mxu0 0
        %1760 = vmatprep.subr.bf16.mxu0 0
        %1761 = vmatpush1.bf16.msra.mxu0 0
        %1762 = vmatprep.subr.bf16.mxu0 0
        %1763 = vmatpush1.bf16.msra.mxu0 0
        %1764 = vmatprep.subr.bf16.mxu0 0
        %1765 = vmatpush1.bf16.msra.mxu0 0
        %1766 = vmatprep.subr.bf16.mxu0 0
        %1767 = vmatpush1.bf16.msra.mxu0 0
        %1768 = vmatprep.subr.bf16.mxu0 0
        %1769 = vmatpush1.bf16.msra.mxu0 0
        %1770 = vmatprep.subr.bf16.mxu0 0
        %1771 = vmatpush1.bf16.msra.mxu0 0
        %1772 = vmatprep.mubr.bf16.mxu0 0
        %1773 = vmatmul.mubr.bf16.gmra.mrb[0].mxu0 %v1691
        %v1774 = vpop.f32.mrb[0].mxu0
        %v1775 = vadd.f32 0.0, %v1774
        %v1776 = vpop.f32.mrb[0].mxu0
        %v1777 = vpop.f32.mrb[0].mxu0
        %v1778 = vadd.f32 0.0, %v1777
        %v1779 = vpop.f32.mrb[0].mxu0
        %1780 = vdwg.mxu0
        %v1781 = vpack.c.bf16 %v1778, %v1775
        %s1782 = scalar_lea.vmem %s5, 12
        %v1783 = vld [vmem:[%s1782] sm:$0xf]
        %v1785 = vsel %vm501, %v1781, 0
        %v1788 = vsel %vm1003, %v1783, 0
        %1790 = vmatprep.subr.bf16.mxu0 0
        %1791 = vmatpush1.bf16.msra.mxu0 %v1788
        %1792 = vmatprep.subr.bf16.mxu0 0
        %1793 = vmatpush1.bf16.msra.mxu0 0
        %1794 = vmatprep.subr.bf16.mxu0 0
        %1795 = vmatpush1.bf16.msra.mxu0 0
        %1796 = vmatprep.subr.bf16.mxu0 0
        %1797 = vmatpush1.bf16.msra.mxu0 0
        %1798 = vmatprep.subr.bf16.mxu0 0
        %1799 = vmatpush1.bf16.msra.mxu0 0
        %1800 = vmatprep.subr.bf16.mxu0 0
        %1801 = vmatpush1.bf16.msra.mxu0 0
        %1802 = vmatprep.subr.bf16.mxu0 0
        %1803 = vmatpush1.bf16.msra.mxu0 0
        %1804 = vmatprep.subr.bf16.mxu0 0
        %1805 = vmatpush1.bf16.msra.mxu0 0
        %1806 = vmatprep.subr.bf16.mxu0 0
        %1807 = vmatpush1.bf16.msra.mxu0 0
        %1808 = vmatprep.subr.bf16.mxu0 0
        %1809 = vmatpush1.bf16.msra.mxu0 0
        %1810 = vmatprep.subr.bf16.mxu0 0
        %1811 = vmatpush1.bf16.msra.mxu0 0
        %1812 = vmatprep.subr.bf16.mxu0 0
        %1813 = vmatpush1.bf16.msra.mxu0 0
        %1814 = vmatprep.subr.bf16.mxu0 0
        %1815 = vmatpush1.bf16.msra.mxu0 0
        %1816 = vmatprep.subr.bf16.mxu0 0
        %1817 = vmatpush1.bf16.msra.mxu0 0
        %1818 = vmatprep.subr.bf16.mxu0 0
        %1819 = vmatpush1.bf16.msra.mxu0 0
        %1820 = vmatprep.subr.bf16.mxu0 0
        %1821 = vmatpush1.bf16.msra.mxu0 0
        %1822 = vmatprep.mubr.bf16.mxu0 0
        %1823 = vmatmul.mubr.bf16.gmra.mrb[0].mxu0 %v1785
        %v1824 = vpop.f32.mrb[0].mxu0
        %v1825 = vadd.f32 0.0, %v1824
        %v1826 = vpop.f32.mrb[0].mxu0
        %v1827 = vpop.f32.mrb[0].mxu0
        %v1828 = vadd.f32 0.0, %v1827
        %v1829 = vpop.f32.mrb[0].mxu0
        %1830 = vdwg.mxu0
        %v1831 = vadd.f32 %v1462, %v1825
        %v1832 = vadd.f32 %v1463, %v1828
        %v1833 = vld [vmem:[%s6] sm:$0x1]
        %v1835 = vlaneseq
        %v1836 = vshrl.u32 %v1835, 7
        %v1837 = vsub.s32 0, %v1836
        %v1838 = vrot.slane %v1833, %v1837
        %v1840 = vadd.f32 %v1831, %v1838
        %v1841 = vadd.f32 %v1832, %v1838
        %1842 = vst.msk [vmem:[%s326] sm:$0xff] %vm383, %v1840
        %1843 = vst.msk [vmem:[%s326 + $0x8] sm:$0xff] %vm383, %v1841
        %s1844 = sand.u32 %s207, 1
        %s1845 = scalar_lea.sflag [#allocation3], %s1844
        %s1846 = sand.u32 %s207, 1
        %s1847 = smul.addr %s1846, 16
        %s1848 = scalar_lea.vmem [#allocation2], %s1847
        // Predicated region
        $region49: #{tpu_custom_call.1} parent=47 // pred_check
          %p1849 = pneg %p217
        $region50: #{tpu_custom_call.1} parent=47 // pred_check_branch
          %1851 = sbr.rel (%p1849) target = $region52
        $region51: #{tpu_custom_call.1} parent=47 // pred_region
          %s1852 = smul.u32 2, %s26
          %s1854 = ssub.s32 256, 256
          %1855 = vsyncadd %s1845, %s1854
          %s1856 = smul.addr %s25, 2
          %s1857 = sadd.s32 %s1852, %s1856
          %s1858 = smul.addr %s1857, 128
          %s1859 = scalar_lea.hbm %s7, %s1858
          %s1860 = sshll.u32 %s1848, 4
          %s1861 = int_to_ptr.vmem [resolvable:$true] %s1860
          %1866 = dma.vmem_to_hbm [thread:$0]  %s1861, 256, %s1859, %s1845, 128, 128, 8
        $region52: #{tpu_custom_call.1} parent=47 // pred_fallthru
          _
      $region48: #{tpu_custom_call.1} parent=5 // pred_fallthru
        _
      %p1867 = scmp.le.s32.totalorder 2, %s16
      // Predicated region
      $region53: #{tpu_custom_call.1} parent=5 // pred_check
        %p1868 = pneg %p1867
      $region54: #{tpu_custom_call.1} parent=5 // pred_check_branch
        %1870 = sbr.rel (%p1868) target = $region56
      $region55: #{tpu_custom_call.1} parent=5 // pred_region
        %s1871 = ssub.s32 %s16, 2
        // Predicated region
        $region57: #{tpu_custom_call.1} parent=55 // pred_check
          %p1872 = pneg %p223
        $region58: #{tpu_custom_call.1} parent=55 // pred_check_branch
          %1874 = sbr.rel (%p1872) target = $region60
        $region59: #{tpu_custom_call.1} parent=55 // pred_region
          %s1875 = sand.u32 %s208, 1
          %s1876 = scalar_lea.sflag [#allocation3], %s1875
          %s1877 = sand.u32 %s208, 1
          %s1878 = smul.addr %s1877, 16
          %s1879 = scalar_lea.vmem [#allocation2], %s1878
          %1880 = dma.done %s1876, 256
        $region60: #{tpu_custom_call.1} parent=55 // pred_fallthru
          _
      $region56: #{tpu_custom_call.1} parent=5 // pred_fallthru
        _
    $region6: #{tpu_custom_call.1} parent=1 // loop_footer
      %s20 = sadd.s32 1, %s16
    $region7: #{tpu_custom_call.1} parent=1 // loop_footer_branch
      %15 = sbr.rel target = $region3
    $region8: #{tpu_custom_call.1} parent=1 // loop_exit
      _
    %1881 = vsyncpa [#allocation3], 1
    %s1882 = scalar_lea.sflag [#allocation3], 1
    %1883 = vsyncpa %s1882, 1

</llo_original>
